<compile_context>
chip_gen: v5e
topology: v5e:2x2
jax: 0.10.0
libtpu: 0.0.40
codegen_flags: <defaults>
</compile_context>

<pallas_src>
import jax
import jax.numpy as jnp
from jax.experimental import pallas as pl
from jax.experimental.pallas import tpu as pltpu

INPUT_DIM = 75
HIDDEN_DIM = 128
LABEL_SIZE = 49
SEQ_LEN = 8

D_PAD = 128   # input_dim padded to lane width
L_PAD = 128   # label_size padded to lane width
B_TILE = 8    # batch tile = sublane width; real batch is zero-padded to this


def lstm_classifier_kernel(x_ref, wih_ref, whh_ref, b_ref, wfc_ref, bfc_ref,
                           out_ref):
    """LSTM recurrence + FC + log_softmax for one batch tile.

    x_ref   : (T, B_TILE, D_PAD) bf16   zero-padded input sequence tile
    wih_ref : (D_PAD, 4H)        bf16   input->gates weight (transposed)
    whh_ref : (H, 4H)            bf16   hidden->gates weight (transposed)
    b_ref   : (1, 4H)            f32    combined bias (b_ih + b_hh)
    wfc_ref : (H, L_PAD)         bf16   FC weight (transposed, zero-pad cols)
    bfc_ref : (1, L_PAD)         f32    FC bias (-1e30 in pad lanes)
    out_ref : (B_TILE, L_PAD)    f32    log-probabilities
    """
    T, B, _ = x_ref.shape
    H = whh_ref.shape[0]

    # Hoisted input projection for every (t, b) row in one MXU pass,
    # bias folded in.  (T*B, D_PAD)bf16 @ (D_PAD, 4H)bf16 -> f32.
    x_flat = x_ref[...].reshape(T * B, D_PAD)
    xg = jnp.dot(x_flat, wih_ref[...],
                 preferred_element_type=jnp.float32) + b_ref[...]   # (T*B, 4H)

    w_hh = whh_ref[...]                                              # bf16
    h = jnp.zeros((B, H), jnp.float32)
    c = jnp.zeros((B, H), jnp.float32)

    # Static unroll (T == 8): h/c live in vregs; only the bf16 h @ W_hh
    # matmul, the gate nonlinearities and two element-wise updates sit on the
    # serial recurrent chain.  All element-wise ops are (8,128) = full vregs.
    for t in range(T):
        gates = xg[t * B:(t + 1) * B, :] + jnp.dot(
            h.astype(jnp.bfloat16), w_hh, preferred_element_type=jnp.float32)
        # PyTorch gate order: i, f, g, o.
        i_g = jax.nn.sigmoid(gates[:, 0:H])
        f_g = jax.nn.sigmoid(gates[:, H:2 * H])
        g_g = jnp.tanh(gates[:, 2 * H:3 * H])
        o_g = jax.nn.sigmoid(gates[:, 3 * H:4 * H])
        c = f_g * c + i_g * g_g
        h = o_g * jnp.tanh(c)

    # fullyConnected(lstm_out[-1]) + log_softmax.  Pad lanes carry a -1e30
    # bias, so exp() of them vanishes and the real lanes are exact.
    y = jnp.dot(h.astype(jnp.bfloat16), wfc_ref[...],
                preferred_element_type=jnp.float32) + bfc_ref[...]  # (B, L_PAD)
    out_ref[...] = jax.nn.log_softmax(y, axis=-1)


def prepare_params(w_ih, w_hh, b_ih, b_hh, w_fc, b_fc):
    """One-time weight prep (pad + transpose + bf16 cast); amortized across calls."""
    H = w_hh.shape[1]
    D = w_ih.shape[1]
    L = w_fc.shape[0]
    wih_t = jnp.zeros((D_PAD, 4 * H), jnp.bfloat16).at[:D, :].set(
        jnp.transpose(w_ih).astype(jnp.bfloat16))
    whh_t = jnp.transpose(w_hh).astype(jnp.bfloat16)                 # (H, 4H)
    bias = (b_ih + b_hh).reshape(1, 4 * H).astype(jnp.float32)
    wfc_t = jnp.zeros((H, L_PAD), jnp.bfloat16).at[:, :L].set(
        jnp.transpose(w_fc).astype(jnp.bfloat16))
    bfc = jnp.full((1, L_PAD), -1e30, jnp.float32).at[0, :L].set(
        b_fc.astype(jnp.float32))
    return wih_t, whh_t, bias, wfc_t, bfc


def lstm_classifier_forward(x, prepared):
    """x: (T, B, D) float32.  Returns (B, LABEL_SIZE) log-probs."""
    T, B, D = x.shape
    wih_t, whh_t, bias, wfc_t, bfc = prepared
    H = whh_t.shape[0]

    # Pad batch to a multiple of B_TILE (sublanes) and D -> D_PAD (lanes).
    n_chunks = pl.cdiv(B, B_TILE)
    B_pad = n_chunks * B_TILE
    x_pad = jnp.zeros((T, B_pad, D_PAD), jnp.bfloat16)
    x_pad = x_pad.at[:, :B, :D].set(x.astype(jnp.bfloat16))

    flops = 2 * T * B_pad * (D_PAD * 4 * H + H * 4 * H) + 2 * B_pad * H * L_PAD
    transcendentals = T * B_pad * 5 * H + B_pad * L_PAD
    bytes_accessed = (x_pad.size * 2 + wih_t.size * 2 + whh_t.size * 2
                      + bias.size * 4 + wfc_t.size * 2 + bfc.size * 4
                      + B_pad * L_PAD * 4)

    grid_spec = pltpu.PrefetchScalarGridSpec(
        num_scalar_prefetch=0,
        grid=(n_chunks,),
        in_specs=[
            pl.BlockSpec((T, B_TILE, D_PAD), lambda i: (0, i, 0)),
            pl.BlockSpec((D_PAD, 4 * H), lambda i: (0, 0)),
            pl.BlockSpec((H, 4 * H), lambda i: (0, 0)),
            pl.BlockSpec((1, 4 * H), lambda i: (0, 0)),
            pl.BlockSpec((H, L_PAD), lambda i: (0, 0)),
            pl.BlockSpec((1, L_PAD), lambda i: (0, 0)),
        ],
        out_specs=pl.BlockSpec((B_TILE, L_PAD), lambda i: (i, 0)),
    )

    out_pad = pl.pallas_call(
        lstm_classifier_kernel,
        out_shape=jax.ShapeDtypeStruct((B_pad, L_PAD), jnp.float32),
        grid_spec=grid_spec,
        compiler_params=pltpu.CompilerParams(
            dimension_semantics=("parallel",)),   # batch chunks across TCs (v7x)
        cost_estimate=pl.CostEstimate(flops=flops,
                                      transcendentals=transcendentals,
                                      bytes_accessed=bytes_accessed),
    )(x_pad, wih_t, whh_t, bias, wfc_t, bfc)

    return out_pad[:B, :LABEL_SIZE]


def lstm_classifier_reference(x, w_ih, w_hh, b_ih, b_hh, w_fc, b_fc):
    """Pure-JAX f32 reference mirroring PyTorch nn.LSTM + Linear + log_softmax."""
    T, B, D = x.shape
    H = w_hh.shape[1]
    h = jnp.zeros((B, H), jnp.float32)
    c = jnp.zeros((B, H), jnp.float32)
    for t in range(T):
        x_t = x[t].astype(jnp.float32)                               # (B, D)
        gates = x_t @ w_ih.T + h @ w_hh.T + b_ih + b_hh              # (B, 4H)
        i_g = jax.nn.sigmoid(gates[:, 0:H])
        f_g = jax.nn.sigmoid(gates[:, H:2 * H])
        g_g = jnp.tanh(gates[:, 2 * H:3 * H])
        o_g = jax.nn.sigmoid(gates[:, 3 * H:4 * H])
        c = f_g * c + i_g * g_g
        h = o_g * jnp.tanh(c)
    y = h @ w_fc.T + b_fc
    return jax.nn.log_softmax(y, axis=-1)


def init_params(key, input_dim=INPUT_DIM, hidden_dim=HIDDEN_DIM,
                label_size=LABEL_SIZE):
    """Deterministic init mirroring PyTorch's uniform(-1/sqrt(H), 1/sqrt(H))."""
    ks = jax.random.split(key, 6)
    s = 1.0 / jnp.sqrt(hidden_dim)
    w_ih = jax.random.uniform(ks[0], (4 * hidden_dim, input_dim),
                              jnp.float32, -s, s)
    w_hh = jax.random.uniform(ks[1], (4 * hidden_dim, hidden_dim),
                              jnp.float32, -s, s)
    b_ih = jax.random.uniform(ks[2], (4 * hidden_dim,), jnp.float32, -s, s)
    b_hh = jax.random.uniform(ks[3], (4 * hidden_dim,), jnp.float32, -s, s)
    w_fc = jax.random.uniform(ks[4], (label_size, hidden_dim),
                              jnp.float32, -s, s)
    b_fc = jax.random.uniform(ks[5], (label_size,), jnp.float32, -s, s)
    return w_ih, w_hh, b_ih, b_hh, w_fc, b_fc


if __name__ == "__main__":
    key = jax.random.PRNGKey(0)
    k_x, k_p = jax.random.split(key)

    # input: (seq_len, batch=1, input_dim), batch=1 per the module's init_hidden
    # TODO(synk): the module carries self.hidden across forward() calls; this
    # kernel uses the zero init_hidden state each call (single-forward semantics).
    x = jax.random.normal(k_x, (SEQ_LEN, 1, INPUT_DIM), jnp.float32)
    raw = init_params(k_p)

    prepared = prepare_params(*raw)                 # one-time weight prep
    prepared = tuple(jax.block_until_ready(p) for p in prepared)

    fwd = jax.jit(lstm_classifier_forward)
    log_probs = jax.block_until_ready(fwd(x, prepared))

    assert log_probs.shape == (1, LABEL_SIZE)
    assert bool(jnp.all(jnp.isfinite(log_probs)))
    # log_softmax rows should sum (in prob space) to ~1
    assert bool(jnp.allclose(jnp.sum(jnp.exp(log_probs), axis=-1), 1.0,
                             atol=1e-4))
    # match the pure-JAX f32 reference (bf16 MXU operands -> relaxed tolerance)
    ref = lstm_classifier_reference(x, *raw)
    assert bool(jnp.allclose(log_probs, ref, atol=3e-2, rtol=3e-2))
    print("KERNEL_OK")
</pallas_src>

<mosaic_0001>
module attributes {stable_mosaic.version = 11 : i64} {
  func.func @lstm_classifier_kernel(%arg0: i32, %arg1: memref<8x8x128xbf16, #tpu.memory_space<vmem>>, %arg2: memref<128x512xbf16, #tpu.memory_space<vmem>>, %arg3: memref<128x512xbf16, #tpu.memory_space<vmem>>, %arg4: memref<1x512xf32, #tpu.memory_space<vmem>>, %arg5: memref<128x128xbf16, #tpu.memory_space<vmem>>, %arg6: memref<1x128xf32, #tpu.memory_space<vmem>>, %arg7: memref<8x128xf32, #tpu.memory_space<vmem>>) attributes {dimension_semantics = [#tpu.dimension_semantics<parallel>], iteration_bounds = array<i64: 1>, scalar_prefetch = 0 : i64, scratch_operands = 0 : i64, tpu.core_type = #tpu.core_type<tc>, window_params = [{transform_indices = @transform_0, window_bounds = array<i64: 8, 8, 128>}, {pipeline_mode = #tpu.pipeline_mode<synchronous>, transform_indices = @transform_1, window_bounds = array<i64: 128, 512>}, {pipeline_mode = #tpu.pipeline_mode<synchronous>, transform_indices = @transform_2, window_bounds = array<i64: 128, 512>}, {pipeline_mode = #tpu.pipeline_mode<synchronous>, transform_indices = @transform_3, window_bounds = array<i64: 1, 512>}, {pipeline_mode = #tpu.pipeline_mode<synchronous>, transform_indices = @transform_4, window_bounds = array<i64: 128, 128>}, {pipeline_mode = #tpu.pipeline_mode<synchronous>, transform_indices = @transform_5, window_bounds = array<i64: 1, 128>}, {transform_indices = @transform_6, window_bounds = array<i64: 8, 128>}]} {
    %c0 = arith.constant 0 : index
    %c0_0 = arith.constant 0 : index
    %c0_1 = arith.constant 0 : index
    %0 = vector.load %arg1[%c0, %c0_0, %c0_1] : memref<8x8x128xbf16, #tpu.memory_space<vmem>>, vector<8x8x128xbf16>
    %1 = vector.shape_cast %0 : vector<8x8x128xbf16> to vector<64x128xbf16>
    %c0_2 = arith.constant 0 : index
    %c0_3 = arith.constant 0 : index
    %2 = vector.load %arg2[%c0_2, %c0_3] : memref<128x512xbf16, #tpu.memory_space<vmem>>, vector<128x512xbf16>
    %cst = arith.constant dense<0.000000e+00> : vector<64x512xf32>
    %3 = tpu.matmul %1, %2, %cst {dimension_numbers = #tpu.dot_dimension_numbers<[1], [0], [0], [1], [0, 0, 1, 1], [], []>} : vector<64x128xbf16>, vector<128x512xbf16>, vector<64x512xf32> -> vector<64x512xf32>
    %c0_4 = arith.constant 0 : index
    %c0_5 = arith.constant 0 : index
    %4 = vector.load %arg4[%c0_4, %c0_5] : memref<1x512xf32, #tpu.memory_space<vmem>>, vector<1x512xf32>
    %5 = vector.broadcast %4 : vector<1x512xf32> to vector<64x512xf32>
    %6 = arith.addf %3, %5 : vector<64x512xf32>
    %c0_6 = arith.constant 0 : index
    %c0_7 = arith.constant 0 : index
    %7 = vector.load %arg3[%c0_6, %c0_7] : memref<128x512xbf16, #tpu.memory_space<vmem>>, vector<128x512xbf16>
    %cst_8 = arith.constant 0.000000e+00 : f32
    %8 = vector.broadcast %cst_8 : f32 to vector<8x128xf32>
    %cst_9 = arith.constant 0.000000e+00 : f32
    %9 = vector.broadcast %cst_9 : f32 to vector<8x128xf32>
    %10 = vector.extract_strided_slice %6 {offsets = [0, 0], sizes = [8, 512], strides = [1, 1]} : vector<64x512xf32> to vector<8x512xf32>
    %11 = arith.truncf %8 : vector<8x128xf32> to vector<8x128xbf16>
    %cst_10 = arith.constant dense<0.000000e+00> : vector<8x512xf32>
    %12 = tpu.matmul %11, %7, %cst_10 {dimension_numbers = #tpu.dot_dimension_numbers<[1], [0], [0], [1], [0, 0, 1, 1], [], []>} : vector<8x128xbf16>, vector<128x512xbf16>, vector<8x512xf32> -> vector<8x512xf32>
    %13 = arith.addf %10, %12 : vector<8x512xf32>
    %14 = vector.extract_strided_slice %13 {offsets = [0, 0], sizes = [8, 128], strides = [1, 1]} : vector<8x512xf32> to vector<8x128xf32>
    %15 = arith.negf %14 : vector<8x128xf32>
    %16 = math.exp %15 : vector<8x128xf32>
    %cst_11 = arith.constant 1.000000e+00 : f32
    %17 = vector.broadcast %cst_11 : f32 to vector<8x128xf32>
    %18 = arith.addf %17, %16 : vector<8x128xf32>
    %19 = arith.divf %17, %18 : vector<8x128xf32>
    %20 = vector.extract_strided_slice %13 {offsets = [0, 128], sizes = [8, 128], strides = [1, 1]} : vector<8x512xf32> to vector<8x128xf32>
    %21 = arith.negf %20 : vector<8x128xf32>
    %22 = math.exp %21 : vector<8x128xf32>
    %cst_12 = arith.constant 1.000000e+00 : f32
    %23 = vector.broadcast %cst_12 : f32 to vector<8x128xf32>
    %24 = arith.addf %23, %22 : vector<8x128xf32>
    %25 = arith.divf %23, %24 : vector<8x128xf32>
    %26 = vector.extract_strided_slice %13 {offsets = [0, 256], sizes = [8, 128], strides = [1, 1]} : vector<8x512xf32> to vector<8x128xf32>
    %27 = math.tanh %26 : vector<8x128xf32>
    %28 = vector.extract_strided_slice %13 {offsets = [0, 384], sizes = [8, 128], strides = [1, 1]} : vector<8x512xf32> to vector<8x128xf32>
    %29 = arith.negf %28 : vector<8x128xf32>
    %30 = math.exp %29 : vector<8x128xf32>
    %cst_13 = arith.constant 1.000000e+00 : f32
    %31 = vector.broadcast %cst_13 : f32 to vector<8x128xf32>
    %32 = arith.addf %31, %30 : vector<8x128xf32>
    %33 = arith.divf %31, %32 : vector<8x128xf32>
    %34 = arith.mulf %25, %9 : vector<8x128xf32>
    %35 = arith.mulf %19, %27 : vector<8x128xf32>
    %36 = arith.addf %34, %35 : vector<8x128xf32>
    %37 = math.tanh %36 : vector<8x128xf32>
    %38 = arith.mulf %33, %37 : vector<8x128xf32>
    %39 = vector.extract_strided_slice %6 {offsets = [8, 0], sizes = [8, 512], strides = [1, 1]} : vector<64x512xf32> to vector<8x512xf32>
    %40 = arith.truncf %38 : vector<8x128xf32> to vector<8x128xbf16>
    %cst_14 = arith.constant dense<0.000000e+00> : vector<8x512xf32>
    %41 = tpu.matmul %40, %7, %cst_14 {dimension_numbers = #tpu.dot_dimension_numbers<[1], [0], [0], [1], [0, 0, 1, 1], [], []>} : vector<8x128xbf16>, vector<128x512xbf16>, vector<8x512xf32> -> vector<8x512xf32>
    %42 = arith.addf %39, %41 : vector<8x512xf32>
    %43 = vector.extract_strided_slice %42 {offsets = [0, 0], sizes = [8, 128], strides = [1, 1]} : vector<8x512xf32> to vector<8x128xf32>
    %44 = arith.negf %43 : vector<8x128xf32>
    %45 = math.exp %44 : vector<8x128xf32>
    %cst_15 = arith.constant 1.000000e+00 : f32
    %46 = vector.broadcast %cst_15 : f32 to vector<8x128xf32>
    %47 = arith.addf %46, %45 : vector<8x128xf32>
    %48 = arith.divf %46, %47 : vector<8x128xf32>
    %49 = vector.extract_strided_slice %42 {offsets = [0, 128], sizes = [8, 128], strides = [1, 1]} : vector<8x512xf32> to vector<8x128xf32>
    %50 = arith.negf %49 : vector<8x128xf32>
    %51 = math.exp %50 : vector<8x128xf32>
    %cst_16 = arith.constant 1.000000e+00 : f32
    %52 = vector.broadcast %cst_16 : f32 to vector<8x128xf32>
    %53 = arith.addf %52, %51 : vector<8x128xf32>
    %54 = arith.divf %52, %53 : vector<8x128xf32>
    %55 = vector.extract_strided_slice %42 {offsets = [0, 256], sizes = [8, 128], strides = [1, 1]} : vector<8x512xf32> to vector<8x128xf32>
    %56 = math.tanh %55 : vector<8x128xf32>
    %57 = vector.extract_strided_slice %42 {offsets = [0, 384], sizes = [8, 128], strides = [1, 1]} : vector<8x512xf32> to vector<8x128xf32>
    %58 = arith.negf %57 : vector<8x128xf32>
    %59 = math.exp %58 : vector<8x128xf32>
    %cst_17 = arith.constant 1.000000e+00 : f32
    %60 = vector.broadcast %cst_17 : f32 to vector<8x128xf32>
    %61 = arith.addf %60, %59 : vector<8x128xf32>
    %62 = arith.divf %60, %61 : vector<8x128xf32>
    %63 = arith.mulf %54, %36 : vector<8x128xf32>
    %64 = arith.mulf %48, %56 : vector<8x128xf32>
    %65 = arith.addf %63, %64 : vector<8x128xf32>
    %66 = math.tanh %65 : vector<8x128xf32>
    %67 = arith.mulf %62, %66 : vector<8x128xf32>
    %68 = vector.extract_strided_slice %6 {offsets = [16, 0], sizes = [8, 512], strides = [1, 1]} : vector<64x512xf32> to vector<8x512xf32>
    %69 = arith.truncf %67 : vector<8x128xf32> to vector<8x128xbf16>
    %cst_18 = arith.constant dense<0.000000e+00> : vector<8x512xf32>
    %70 = tpu.matmul %69, %7, %cst_18 {dimension_numbers = #tpu.dot_dimension_numbers<[1], [0], [0], [1], [0, 0, 1, 1], [], []>} : vector<8x128xbf16>, vector<128x512xbf16>, vector<8x512xf32> -> vector<8x512xf32>
    %71 = arith.addf %68, %70 : vector<8x512xf32>
    %72 = vector.extract_strided_slice %71 {offsets = [0, 0], sizes = [8, 128], strides = [1, 1]} : vector<8x512xf32> to vector<8x128xf32>
    %73 = arith.negf %72 : vector<8x128xf32>
    %74 = math.exp %73 : vector<8x128xf32>
    %cst_19 = arith.constant 1.000000e+00 : f32
    %75 = vector.broadcast %cst_19 : f32 to vector<8x128xf32>
    %76 = arith.addf %75, %74 : vector<8x128xf32>
    %77 = arith.divf %75, %76 : vector<8x128xf32>
    %78 = vector.extract_strided_slice %71 {offsets = [0, 128], sizes = [8, 128], strides = [1, 1]} : vector<8x512xf32> to vector<8x128xf32>
    %79 = arith.negf %78 : vector<8x128xf32>
    %80 = math.exp %79 : vector<8x128xf32>
    %cst_20 = arith.constant 1.000000e+00 : f32
    %81 = vector.broadcast %cst_20 : f32 to vector<8x128xf32>
    %82 = arith.addf %81, %80 : vector<8x128xf32>
    %83 = arith.divf %81, %82 : vector<8x128xf32>
    %84 = vector.extract_strided_slice %71 {offsets = [0, 256], sizes = [8, 128], strides = [1, 1]} : vector<8x512xf32> to vector<8x128xf32>
    %85 = math.tanh %84 : vector<8x128xf32>
    %86 = vector.extract_strided_slice %71 {offsets = [0, 384], sizes = [8, 128], strides = [1, 1]} : vector<8x512xf32> to vector<8x128xf32>
    %87 = arith.negf %86 : vector<8x128xf32>
    %88 = math.exp %87 : vector<8x128xf32>
    %cst_21 = arith.constant 1.000000e+00 : f32
    %89 = vector.broadcast %cst_21 : f32 to vector<8x128xf32>
    %90 = arith.addf %89, %88 : vector<8x128xf32>
    %91 = arith.divf %89, %90 : vector<8x128xf32>
    %92 = arith.mulf %83, %65 : vector<8x128xf32>
    %93 = arith.mulf %77, %85 : vector<8x128xf32>
    %94 = arith.addf %92, %93 : vector<8x128xf32>
    %95 = math.tanh %94 : vector<8x128xf32>
    %96 = arith.mulf %91, %95 : vector<8x128xf32>
    %97 = vector.extract_strided_slice %6 {offsets = [24, 0], sizes = [8, 512], strides = [1, 1]} : vector<64x512xf32> to vector<8x512xf32>
    %98 = arith.truncf %96 : vector<8x128xf32> to vector<8x128xbf16>
    %cst_22 = arith.constant dense<0.000000e+00> : vector<8x512xf32>
    %99 = tpu.matmul %98, %7, %cst_22 {dimension_numbers = #tpu.dot_dimension_numbers<[1], [0], [0], [1], [0, 0, 1, 1], [], []>} : vector<8x128xbf16>, vector<128x512xbf16>, vector<8x512xf32> -> vector<8x512xf32>
    %100 = arith.addf %97, %99 : vector<8x512xf32>
    %101 = vector.extract_strided_slice %100 {offsets = [0, 0], sizes = [8, 128], strides = [1, 1]} : vector<8x512xf32> to vector<8x128xf32>
    %102 = arith.negf %101 : vector<8x128xf32>
    %103 = math.exp %102 : vector<8x128xf32>
    %cst_23 = arith.constant 1.000000e+00 : f32
    %104 = vector.broadcast %cst_23 : f32 to vector<8x128xf32>
    %105 = arith.addf %104, %103 : vector<8x128xf32>
    %106 = arith.divf %104, %105 : vector<8x128xf32>
    %107 = vector.extract_strided_slice %100 {offsets = [0, 128], sizes = [8, 128], strides = [1, 1]} : vector<8x512xf32> to vector<8x128xf32>
    %108 = arith.negf %107 : vector<8x128xf32>
    %109 = math.exp %108 : vector<8x128xf32>
    %cst_24 = arith.constant 1.000000e+00 : f32
    %110 = vector.broadcast %cst_24 : f32 to vector<8x128xf32>
    %111 = arith.addf %110, %109 : vector<8x128xf32>
    %112 = arith.divf %110, %111 : vector<8x128xf32>
    %113 = vector.extract_strided_slice %100 {offsets = [0, 256], sizes = [8, 128], strides = [1, 1]} : vector<8x512xf32> to vector<8x128xf32>
    %114 = math.tanh %113 : vector<8x128xf32>
    %115 = vector.extract_strided_slice %100 {offsets = [0, 384], sizes = [8, 128], strides = [1, 1]} : vector<8x512xf32> to vector<8x128xf32>
    %116 = arith.negf %115 : vector<8x128xf32>
    %117 = math.exp %116 : vector<8x128xf32>
    %cst_25 = arith.constant 1.000000e+00 : f32
    %118 = vector.broadcast %cst_25 : f32 to vector<8x128xf32>
    %119 = arith.addf %118, %117 : vector<8x128xf32>
    %120 = arith.divf %118, %119 : vector<8x128xf32>
    %121 = arith.mulf %112, %94 : vector<8x128xf32>
    %122 = arith.mulf %106, %114 : vector<8x128xf32>
    %123 = arith.addf %121, %122 : vector<8x128xf32>
    %124 = math.tanh %123 : vector<8x128xf32>
    %125 = arith.mulf %120, %124 : vector<8x128xf32>
    %126 = vector.extract_strided_slice %6 {offsets = [32, 0], sizes = [8, 512], strides = [1, 1]} : vector<64x512xf32> to vector<8x512xf32>
    %127 = arith.truncf %125 : vector<8x128xf32> to vector<8x128xbf16>
    %cst_26 = arith.constant dense<0.000000e+00> : vector<8x512xf32>
    %128 = tpu.matmul %127, %7, %cst_26 {dimension_numbers = #tpu.dot_dimension_numbers<[1], [0], [0], [1], [0, 0, 1, 1], [], []>} : vector<8x128xbf16>, vector<128x512xbf16>, vector<8x512xf32> -> vector<8x512xf32>
    %129 = arith.addf %126, %128 : vector<8x512xf32>
    %130 = vector.extract_strided_slice %129 {offsets = [0, 0], sizes = [8, 128], strides = [1, 1]} : vector<8x512xf32> to vector<8x128xf32>
    %131 = arith.negf %130 : vector<8x128xf32>
    %132 = math.exp %131 : vector<8x128xf32>
    %cst_27 = arith.constant 1.000000e+00 : f32
    %133 = vector.broadcast %cst_27 : f32 to vector<8x128xf32>
    %134 = arith.addf %133, %132 : vector<8x128xf32>
    %135 = arith.divf %133, %134 : vector<8x128xf32>
    %136 = vector.extract_strided_slice %129 {offsets = [0, 128], sizes = [8, 128], strides = [1, 1]} : vector<8x512xf32> to vector<8x128xf32>
    %137 = arith.negf %136 : vector<8x128xf32>
    %138 = math.exp %137 : vector<8x128xf32>
    %cst_28 = arith.constant 1.000000e+00 : f32
    %139 = vector.broadcast %cst_28 : f32 to vector<8x128xf32>
    %140 = arith.addf %139, %138 : vector<8x128xf32>
    %141 = arith.divf %139, %140 : vector<8x128xf32>
    %142 = vector.extract_strided_slice %129 {offsets = [0, 256], sizes = [8, 128], strides = [1, 1]} : vector<8x512xf32> to vector<8x128xf32>
    %143 = math.tanh %142 : vector<8x128xf32>
    %144 = vector.extract_strided_slice %129 {offsets = [0, 384], sizes = [8, 128], strides = [1, 1]} : vector<8x512xf32> to vector<8x128xf32>
    %145 = arith.negf %144 : vector<8x128xf32>
    %146 = math.exp %145 : vector<8x128xf32>
    %cst_29 = arith.constant 1.000000e+00 : f32
    %147 = vector.broadcast %cst_29 : f32 to vector<8x128xf32>
    %148 = arith.addf %147, %146 : vector<8x128xf32>
    %149 = arith.divf %147, %148 : vector<8x128xf32>
    %150 = arith.mulf %141, %123 : vector<8x128xf32>
    %151 = arith.mulf %135, %143 : vector<8x128xf32>
    %152 = arith.addf %150, %151 : vector<8x128xf32>
    %153 = math.tanh %152 : vector<8x128xf32>
    %154 = arith.mulf %149, %153 : vector<8x128xf32>
    %155 = vector.extract_strided_slice %6 {offsets = [40, 0], sizes = [8, 512], strides = [1, 1]} : vector<64x512xf32> to vector<8x512xf32>
    %156 = arith.truncf %154 : vector<8x128xf32> to vector<8x128xbf16>
    %cst_30 = arith.constant dense<0.000000e+00> : vector<8x512xf32>
    %157 = tpu.matmul %156, %7, %cst_30 {dimension_numbers = #tpu.dot_dimension_numbers<[1], [0], [0], [1], [0, 0, 1, 1], [], []>} : vector<8x128xbf16>, vector<128x512xbf16>, vector<8x512xf32> -> vector<8x512xf32>
    %158 = arith.addf %155, %157 : vector<8x512xf32>
    %159 = vector.extract_strided_slice %158 {offsets = [0, 0], sizes = [8, 128], strides = [1, 1]} : vector<8x512xf32> to vector<8x128xf32>
    %160 = arith.negf %159 : vector<8x128xf32>
    %161 = math.exp %160 : vector<8x128xf32>
    %cst_31 = arith.constant 1.000000e+00 : f32
    %162 = vector.broadcast %cst_31 : f32 to vector<8x128xf32>
    %163 = arith.addf %162, %161 : vector<8x128xf32>
    %164 = arith.divf %162, %163 : vector<8x128xf32>
    %165 = vector.extract_strided_slice %158 {offsets = [0, 128], sizes = [8, 128], strides = [1, 1]} : vector<8x512xf32> to vector<8x128xf32>
    %166 = arith.negf %165 : vector<8x128xf32>
    %167 = math.exp %166 : vector<8x128xf32>
    %cst_32 = arith.constant 1.000000e+00 : f32
    %168 = vector.broadcast %cst_32 : f32 to vector<8x128xf32>
    %169 = arith.addf %168, %167 : vector<8x128xf32>
    %170 = arith.divf %168, %169 : vector<8x128xf32>
    %171 = vector.extract_strided_slice %158 {offsets = [0, 256], sizes = [8, 128], strides = [1, 1]} : vector<8x512xf32> to vector<8x128xf32>
    %172 = math.tanh %171 : vector<8x128xf32>
    %173 = vector.extract_strided_slice %158 {offsets = [0, 384], sizes = [8, 128], strides = [1, 1]} : vector<8x512xf32> to vector<8x128xf32>
    %174 = arith.negf %173 : vector<8x128xf32>
    %175 = math.exp %174 : vector<8x128xf32>
    %cst_33 = arith.constant 1.000000e+00 : f32
    %176 = vector.broadcast %cst_33 : f32 to vector<8x128xf32>
    %177 = arith.addf %176, %175 : vector<8x128xf32>
    %178 = arith.divf %176, %177 : vector<8x128xf32>
    %179 = arith.mulf %170, %152 : vector<8x128xf32>
    %180 = arith.mulf %164, %172 : vector<8x128xf32>
    %181 = arith.addf %179, %180 : vector<8x128xf32>
    %182 = math.tanh %181 : vector<8x128xf32>
    %183 = arith.mulf %178, %182 : vector<8x128xf32>
    %184 = vector.extract_strided_slice %6 {offsets = [48, 0], sizes = [8, 512], strides = [1, 1]} : vector<64x512xf32> to vector<8x512xf32>
    %185 = arith.truncf %183 : vector<8x128xf32> to vector<8x128xbf16>
    %cst_34 = arith.constant dense<0.000000e+00> : vector<8x512xf32>
    %186 = tpu.matmul %185, %7, %cst_34 {dimension_numbers = #tpu.dot_dimension_numbers<[1], [0], [0], [1], [0, 0, 1, 1], [], []>} : vector<8x128xbf16>, vector<128x512xbf16>, vector<8x512xf32> -> vector<8x512xf32>
    %187 = arith.addf %184, %186 : vector<8x512xf32>
    %188 = vector.extract_strided_slice %187 {offsets = [0, 0], sizes = [8, 128], strides = [1, 1]} : vector<8x512xf32> to vector<8x128xf32>
    %189 = arith.negf %188 : vector<8x128xf32>
    %190 = math.exp %189 : vector<8x128xf32>
    %cst_35 = arith.constant 1.000000e+00 : f32
    %191 = vector.broadcast %cst_35 : f32 to vector<8x128xf32>
    %192 = arith.addf %191, %190 : vector<8x128xf32>
    %193 = arith.divf %191, %192 : vector<8x128xf32>
    %194 = vector.extract_strided_slice %187 {offsets = [0, 128], sizes = [8, 128], strides = [1, 1]} : vector<8x512xf32> to vector<8x128xf32>
    %195 = arith.negf %194 : vector<8x128xf32>
    %196 = math.exp %195 : vector<8x128xf32>
    %cst_36 = arith.constant 1.000000e+00 : f32
    %197 = vector.broadcast %cst_36 : f32 to vector<8x128xf32>
    %198 = arith.addf %197, %196 : vector<8x128xf32>
    %199 = arith.divf %197, %198 : vector<8x128xf32>
    %200 = vector.extract_strided_slice %187 {offsets = [0, 256], sizes = [8, 128], strides = [1, 1]} : vector<8x512xf32> to vector<8x128xf32>
    %201 = math.tanh %200 : vector<8x128xf32>
    %202 = vector.extract_strided_slice %187 {offsets = [0, 384], sizes = [8, 128], strides = [1, 1]} : vector<8x512xf32> to vector<8x128xf32>
    %203 = arith.negf %202 : vector<8x128xf32>
    %204 = math.exp %203 : vector<8x128xf32>
    %cst_37 = arith.constant 1.000000e+00 : f32
    %205 = vector.broadcast %cst_37 : f32 to vector<8x128xf32>
    %206 = arith.addf %205, %204 : vector<8x128xf32>
    %207 = arith.divf %205, %206 : vector<8x128xf32>
    %208 = arith.mulf %199, %181 : vector<8x128xf32>
    %209 = arith.mulf %193, %201 : vector<8x128xf32>
    %210 = arith.addf %208, %209 : vector<8x128xf32>
    %211 = math.tanh %210 : vector<8x128xf32>
    %212 = arith.mulf %207, %211 : vector<8x128xf32>
    %213 = vector.extract_strided_slice %6 {offsets = [56, 0], sizes = [8, 512], strides = [1, 1]} : vector<64x512xf32> to vector<8x512xf32>
    %214 = arith.truncf %212 : vector<8x128xf32> to vector<8x128xbf16>
    %cst_38 = arith.constant dense<0.000000e+00> : vector<8x512xf32>
    %215 = tpu.matmul %214, %7, %cst_38 {dimension_numbers = #tpu.dot_dimension_numbers<[1], [0], [0], [1], [0, 0, 1, 1], [], []>} : vector<8x128xbf16>, vector<128x512xbf16>, vector<8x512xf32> -> vector<8x512xf32>
    %216 = arith.addf %213, %215 : vector<8x512xf32>
    %217 = vector.extract_strided_slice %216 {offsets = [0, 0], sizes = [8, 128], strides = [1, 1]} : vector<8x512xf32> to vector<8x128xf32>
    %218 = arith.negf %217 : vector<8x128xf32>
    %219 = math.exp %218 : vector<8x128xf32>
    %cst_39 = arith.constant 1.000000e+00 : f32
    %220 = vector.broadcast %cst_39 : f32 to vector<8x128xf32>
    %221 = arith.addf %220, %219 : vector<8x128xf32>
    %222 = arith.divf %220, %221 : vector<8x128xf32>
    %223 = vector.extract_strided_slice %216 {offsets = [0, 128], sizes = [8, 128], strides = [1, 1]} : vector<8x512xf32> to vector<8x128xf32>
    %224 = arith.negf %223 : vector<8x128xf32>
    %225 = math.exp %224 : vector<8x128xf32>
    %cst_40 = arith.constant 1.000000e+00 : f32
    %226 = vector.broadcast %cst_40 : f32 to vector<8x128xf32>
    %227 = arith.addf %226, %225 : vector<8x128xf32>
    %228 = arith.divf %226, %227 : vector<8x128xf32>
    %229 = vector.extract_strided_slice %216 {offsets = [0, 256], sizes = [8, 128], strides = [1, 1]} : vector<8x512xf32> to vector<8x128xf32>
    %230 = math.tanh %229 : vector<8x128xf32>
    %231 = vector.extract_strided_slice %216 {offsets = [0, 384], sizes = [8, 128], strides = [1, 1]} : vector<8x512xf32> to vector<8x128xf32>
    %232 = arith.negf %231 : vector<8x128xf32>
    %233 = math.exp %232 : vector<8x128xf32>
    %cst_41 = arith.constant 1.000000e+00 : f32
    %234 = vector.broadcast %cst_41 : f32 to vector<8x128xf32>
    %235 = arith.addf %234, %233 : vector<8x128xf32>
    %236 = arith.divf %234, %235 : vector<8x128xf32>
    %237 = arith.mulf %228, %210 : vector<8x128xf32>
    %238 = arith.mulf %222, %230 : vector<8x128xf32>
    %239 = arith.addf %237, %238 : vector<8x128xf32>
    %240 = math.tanh %239 : vector<8x128xf32>
    %241 = arith.mulf %236, %240 : vector<8x128xf32>
    %242 = arith.truncf %241 : vector<8x128xf32> to vector<8x128xbf16>
    %c0_42 = arith.constant 0 : index
    %c0_43 = arith.constant 0 : index
    %243 = vector.load %arg5[%c0_42, %c0_43] : memref<128x128xbf16, #tpu.memory_space<vmem>>, vector<128x128xbf16>
    %cst_44 = arith.constant dense<0.000000e+00> : vector<8x128xf32>
    %244 = tpu.matmul %242, %243, %cst_44 {dimension_numbers = #tpu.dot_dimension_numbers<[1], [0], [0], [1], [0, 0, 1, 1], [], []>} : vector<8x128xbf16>, vector<128x128xbf16>, vector<8x128xf32> -> vector<8x128xf32>
    %c0_45 = arith.constant 0 : index
    %c0_46 = arith.constant 0 : index
    %245 = vector.load %arg6[%c0_45, %c0_46] : memref<1x128xf32, #tpu.memory_space<vmem>>, vector<1x128xf32>
    %246 = vector.broadcast %245 : vector<1x128xf32> to vector<8x128xf32>
    %247 = arith.addf %244, %246 : vector<8x128xf32>
    %cst_47 = arith.constant dense<0xFF800000> : vector<8xf32>
    %248 = vector.multi_reduction <maximumf>, %247, %cst_47 [1] : vector<8x128xf32> to vector<8xf32>
    %cst_48 = arith.constant 0xFF800000 : f32
    %249 = vector.broadcast %cst_48 : f32 to vector<8xf32>
    %250 = arith.maximumf %249, %248 : vector<8xf32>
    %251 = vector.shape_cast %250 : vector<8xf32> to vector<8x1xf32>
    %252 = vector.broadcast %251 : vector<8x1xf32> to vector<8x128xf32>
    %253 = arith.subf %247, %252 : vector<8x128xf32>
    %254 = math.exp %253 : vector<8x128xf32>
    %cst_49 = arith.constant dense<0.000000e+00> : vector<8xf32>
    %255 = vector.multi_reduction <add>, %254, %cst_49 [1] : vector<8x128xf32> to vector<8xf32>
    %256 = vector.shape_cast %255 : vector<8xf32> to vector<8x1xf32>
    %257 = math.log %256 : vector<8x1xf32>
    %258 = vector.broadcast %257 : vector<8x1xf32> to vector<8x128xf32>
    %259 = arith.subf %253, %258 : vector<8x128xf32>
    %c0_50 = arith.constant 0 : index
    %c0_51 = arith.constant 0 : index
    %260 = vector.load %arg7[%c0_50, %c0_51] : memref<8x128xf32, #tpu.memory_space<vmem>>, vector<8x128xf32>
    tpu.vector_store %arg7[%c0_50, %c0_51], %259 {strides = array<i32>} : memref<8x128xf32, #tpu.memory_space<vmem>>, vector<8x128xf32>,
    return
  }
  func.func @transform_0(%arg0: i32) -> (i32, i32, i32) {
    %c0_i32 = arith.constant 0 : i32
    %c0_i32_0 = arith.constant 0 : i32
    %c0_i32_1 = arith.constant 0 : i32
    return %c0_i32, %arg0, %c0_i32_0 : i32, i32, i32
  }
  func.func @transform_1(%arg0: i32) -> (i32, i32) {
    %c0_i32 = arith.constant 0 : i32
    %c0_i32_0 = arith.constant 0 : i32
    %c0_i32_1 = arith.constant 0 : i32
    return %c0_i32, %c0_i32_0 : i32, i32
  }
  func.func @transform_2(%arg0: i32) -> (i32, i32) {
    %c0_i32 = arith.constant 0 : i32
    %c0_i32_0 = arith.constant 0 : i32
    %c0_i32_1 = arith.constant 0 : i32
    return %c0_i32, %c0_i32_0 : i32, i32
  }
  func.func @transform_3(%arg0: i32) -> (i32, i32) {
    %c0_i32 = arith.constant 0 : i32
    %c0_i32_0 = arith.constant 0 : i32
    %c0_i32_1 = arith.constant 0 : i32
    return %c0_i32, %c0_i32_0 : i32, i32
  }
  func.func @transform_4(%arg0: i32) -> (i32, i32) {
    %c0_i32 = arith.constant 0 : i32
    %c0_i32_0 = arith.constant 0 : i32
    %c0_i32_1 = arith.constant 0 : i32
    return %c0_i32, %c0_i32_0 : i32, i32
  }
  func.func @transform_5(%arg0: i32) -> (i32, i32) {
    %c0_i32 = arith.constant 0 : i32
    %c0_i32_0 = arith.constant 0 : i32
    %c0_i32_1 = arith.constant 0 : i32
    return %c0_i32, %c0_i32_0 : i32, i32
  }
  func.func @transform_6(%arg0: i32) -> (i32, i32) {
    %c0_i32 = arith.constant 0 : i32
    %c0_i32_0 = arith.constant 0 : i32
    return %arg0, %c0_i32 : i32, i32
  }
}

</mosaic_0001>

<llo_original>
// kernel: lstm_classifier_forward.1
$region0: #{lstm_classifier_forward.1}
  #allocation0 [shape = 'u32[]', space=smem, size = 0x4, offset = 0x4, fixed_abs, tag = 'smem constant byte address 0x4 - core index']
  #allocation1 [shape = 'u32[72,128]{1,0:T(1,128)}', space=vmem, size = 0x9000, scoped, tag = 'internal scratch']
  %s0 = inlined_call_operand.vmem [shape: bf16[8,8,128], index: 0, kind: input, shape index: {}]
  %s1 = inlined_call_operand.hbm [shape: bf16[128,512], index: 1, kind: input, shape index: {}]
  %s2 = inlined_call_operand.hbm [shape: bf16[128,512], index: 2, kind: input, shape index: {}]
  %s3 = inlined_call_operand.vmem [shape: f32[1,512], index: 3, kind: input, shape index: {}]
  %s4 = inlined_call_operand.hbm [shape: bf16[128,128], index: 4, kind: input, shape index: {}]
  %s5 = inlined_call_operand.vmem [shape: f32[1,128], index: 5, kind: input, shape index: {}]
  %s6 = inlined_call_operand.vmem [shape: f32[8,128], index: 6, kind: output, shape index: {}]
  %s7 = sld [smem:[#allocation0]]
  $region46: #{lstm_classifier_forward.1} parent=0
    _
  %s9 = ssub.s32 1, %s7
  %s10 = scalar_select 0, %s9, %s7
  $region1: #{lstm_classifier_forward.1} parent=0
    #allocation2 [shape = 'u8[131072]{0}', space=vmem, size = 0x20000, scoped, tag = 'input window, operand 1, single buffered']
    #allocation3 [shape = 's32[1]{0}', space=sflag, size = 0x4, scoped, tag = 'scoped memory for lstm_classifier_forward.1']
    #allocation4 [shape = 'u8[131072]{0}', space=vmem, size = 0x20000, scoped, tag = 'input window, operand 2, single buffered']
    #allocation5 [shape = 's32[1]{0}', space=sflag, size = 0x4, scoped, tag = 'scoped memory for lstm_classifier_forward.1']
    #allocation6 [shape = 'u8[32768]{0}', space=vmem, size = 0x8000, scoped, tag = 'input window, operand 4, single buffered']
    %11 = vsyncpa [#allocation3], 0
    %12 = vsyncpa [#allocation5], 0
    // Predicated region
    $region2: #{lstm_classifier_forward.1} parent=1 // pred_check
      _
    $region3: #{lstm_classifier_forward.1} parent=1 // pred_check_branch
      %14 = sbr.rel (0) target = $region5
    $region4: #{lstm_classifier_forward.1} parent=1 // pred_region
      _
    $region5: #{lstm_classifier_forward.1} parent=1 // pred_fallthru
      _
    // Predicated region
    $region6: #{lstm_classifier_forward.1} parent=1 // pred_check
      _
    $region7: #{lstm_classifier_forward.1} parent=1 // pred_check_branch
      %16 = sbr.rel (0) target = $region9
    $region8: #{lstm_classifier_forward.1} parent=1 // pred_region
      %18 = vsyncadd [#allocation3], 0
      %s19 = sshll.u32 %s1, 4
      %s20 = int_to_ptr.hbm [resolvable:$true] %s19
      %s21 = sshll.u32 [#allocation2], 4
      %s22 = int_to_ptr.vmem [resolvable:$true] %s21
      %27 = dma.hbm_to_vmem [thread:$0]  %s20, 4096, %s22, [#allocation3], 256, 256, 16
    $region9: #{lstm_classifier_forward.1} parent=1 // pred_fallthru
      _
    // Predicated region
    $region10: #{lstm_classifier_forward.1} parent=1 // pred_check
      _
    $region11: #{lstm_classifier_forward.1} parent=1 // pred_check_branch
      %29 = sbr.rel (0) target = $region13
    $region12: #{lstm_classifier_forward.1} parent=1 // pred_region
      %31 = vsyncadd [#allocation5], 0
      %s32 = sshll.u32 %s2, 4
      %s33 = int_to_ptr.hbm [resolvable:$true] %s32
      %s34 = sshll.u32 [#allocation4], 4
      %s35 = int_to_ptr.vmem [resolvable:$true] %s34
      %40 = dma.hbm_to_vmem [thread:$0]  %s33, 4096, %s35, [#allocation5], 256, 256, 16
    $region13: #{lstm_classifier_forward.1} parent=1 // pred_fallthru
      _
    // Predicated region
    $region14: #{lstm_classifier_forward.1} parent=1 // pred_check
      _
    $region15: #{lstm_classifier_forward.1} parent=1 // pred_check_branch
      %42 = sbr.rel (0) target = $region17
    $region16: #{lstm_classifier_forward.1} parent=1 // pred_region
      _
    $region17: #{lstm_classifier_forward.1} parent=1 // pred_fallthru
      _
    // Predicated region
    $region18: #{lstm_classifier_forward.1} parent=1 // pred_check
      _
    $region19: #{lstm_classifier_forward.1} parent=1 // pred_check_branch
      %44 = sbr.rel (0) target = $region21
    $region20: #{lstm_classifier_forward.1} parent=1 // pred_region
      %46 = vsyncadd [#allocation5], 0
      %s47 = sshll.u32 %s4, 4
      %s48 = int_to_ptr.hbm [resolvable:$true] %s47
      %s49 = sshll.u32 [#allocation6], 4
      %s50 = int_to_ptr.vmem [resolvable:$true] %s49
      %55 = dma.hbm_to_vmem [thread:$0]  %s48, 1024, %s50, [#allocation5], 64, 64, 4
    $region21: #{lstm_classifier_forward.1} parent=1 // pred_fallthru
      _
    // Predicated region
    $region22: #{lstm_classifier_forward.1} parent=1 // pred_check
      _
    $region23: #{lstm_classifier_forward.1} parent=1 // pred_check_branch
      %57 = sbr.rel (0) target = $region25
    $region24: #{lstm_classifier_forward.1} parent=1 // pred_region
      _
    $region25: #{lstm_classifier_forward.1} parent=1 // pred_fallthru
      _
    // Predicated region
    $region26: #{lstm_classifier_forward.1} parent=1 // pred_check
      _
    $region27: #{lstm_classifier_forward.1} parent=1 // pred_check_branch
      %59 = sbr.rel (0) target = $region29
    $region28: #{lstm_classifier_forward.1} parent=1 // pred_region
      %61 = dma.done [#allocation3], 4096
    $region29: #{lstm_classifier_forward.1} parent=1 // pred_fallthru
      _
    // Predicated region
    $region30: #{lstm_classifier_forward.1} parent=1 // pred_check
      _
    $region31: #{lstm_classifier_forward.1} parent=1 // pred_check_branch
      %63 = sbr.rel (0) target = $region33
    $region32: #{lstm_classifier_forward.1} parent=1 // pred_region
      %65 = dma.done [#allocation5], 4096
    $region33: #{lstm_classifier_forward.1} parent=1 // pred_fallthru
      _
    // Predicated region
    $region34: #{lstm_classifier_forward.1} parent=1 // pred_check
      _
    $region35: #{lstm_classifier_forward.1} parent=1 // pred_check_branch
      %67 = sbr.rel (0) target = $region37
    $region36: #{lstm_classifier_forward.1} parent=1 // pred_region
      %69 = dma.done [#allocation5], 1024
    $region37: #{lstm_classifier_forward.1} parent=1 // pred_fallthru
      _
    %v71 = vld [vmem:[%s0] sm:$0xf]
    %v72 = vld [vmem:[%s0 + $0x4] sm:$0xf]
    %v73 = vld [vmem:[%s0 + $0x8] sm:$0xf]
    %v74 = vld [vmem:[%s0 + $0xc] sm:$0xf]
    %v75 = vld [vmem:[%s0 + $0x10] sm:$0xf]
    %v76 = vld [vmem:[%s0 + $0x14] sm:$0xf]
    %v77 = vld [vmem:[%s0 + $0x18] sm:$0xf]
    %v78 = vld [vmem:[%s0 + $0x1c] sm:$0xf]
    %v79 = vld [vmem:[#allocation2] sm:$0xff]
    %v80 = vld [vmem:[#allocation2 + $0x8] sm:$0xff]
    %v81 = vld [vmem:[#allocation2 + $0x10] sm:$0xff]
    %v82 = vld [vmem:[#allocation2 + $0x18] sm:$0xff]
    %v83 = vld [vmem:[#allocation2 + $0x20] sm:$0xff]
    %v84 = vld [vmem:[#allocation2 + $0x28] sm:$0xff]
    %v85 = vld [vmem:[#allocation2 + $0x30] sm:$0xff]
    %v86 = vld [vmem:[#allocation2 + $0x38] sm:$0xff]
    %v87 = vld [vmem:[#allocation2 + $0x40] sm:$0xff]
    %v88 = vld [vmem:[#allocation2 + $0x48] sm:$0xff]
    %v89 = vld [vmem:[#allocation2 + $0x50] sm:$0xff]
    %v90 = vld [vmem:[#allocation2 + $0x58] sm:$0xff]
    %v91 = vld [vmem:[#allocation2 + $0x60] sm:$0xff]
    %v92 = vld [vmem:[#allocation2 + $0x68] sm:$0xff]
    %v93 = vld [vmem:[#allocation2 + $0x70] sm:$0xff]
    %v94 = vld [vmem:[#allocation2 + $0x78] sm:$0xff]
    %v95 = vld [vmem:[#allocation2 + $0x80] sm:$0xff]
    %v96 = vld [vmem:[#allocation2 + $0x88] sm:$0xff]
    %v97 = vld [vmem:[#allocation2 + $0x90] sm:$0xff]
    %v98 = vld [vmem:[#allocation2 + $0x98] sm:$0xff]
    %v99 = vld [vmem:[#allocation2 + $0xa0] sm:$0xff]
    %v100 = vld [vmem:[#allocation2 + $0xa8] sm:$0xff]
    %v101 = vld [vmem:[#allocation2 + $0xb0] sm:$0xff]
    %v102 = vld [vmem:[#allocation2 + $0xb8] sm:$0xff]
    %v103 = vld [vmem:[#allocation2 + $0xc0] sm:$0xff]
    %v104 = vld [vmem:[#allocation2 + $0xc8] sm:$0xff]
    %v105 = vld [vmem:[#allocation2 + $0xd0] sm:$0xff]
    %v106 = vld [vmem:[#allocation2 + $0xd8] sm:$0xff]
    %v107 = vld [vmem:[#allocation2 + $0xe0] sm:$0xff]
    %v108 = vld [vmem:[#allocation2 + $0xe8] sm:$0xff]
    %v109 = vld [vmem:[#allocation2 + $0xf0] sm:$0xff]
    %v110 = vld [vmem:[#allocation2 + $0xf8] sm:$0xff]
    %v111 = vld [vmem:[%s3] sm:$0xf]
    %v113 = vperm.slane %v111, 0
    %v114 = vperm.slane %v111, 1
    %v115 = vperm.slane %v111, 2
    %v116 = vperm.slane %v111, 3
    %v129 = vunpack.c.l.b16 %v71
    %v130 = vunpack.c.l.b16 %v72
    %v131 = vunpack.c.l.b16 %v73
    %v132 = vunpack.c.l.b16 %v74
    %v133 = vunpack.c.l.b16 %v75
    %v134 = vunpack.c.l.b16 %v76
    %v135 = vunpack.c.l.b16 %v77
    %v136 = vunpack.c.l.b16 %v78
    %v137 = vpack.c.b16 %v130, %v129
    %v138 = vpack.c.b16 %v132, %v131
    %v139 = vpack.c.b16 %v134, %v133
    %v140 = vpack.c.b16 %v136, %v135
    %v177 = vunpack.c.l.b16 %v79
    %v178 = vunpack.c.h.b16 %v79
    %v179 = vunpack.c.l.b16 %v80
    %v180 = vunpack.c.h.b16 %v80
    %v181 = vunpack.c.l.b16 %v81
    %v182 = vunpack.c.h.b16 %v81
    %v183 = vunpack.c.l.b16 %v82
    %v184 = vunpack.c.h.b16 %v82
    %v185 = vunpack.c.l.b16 %v83
    %v186 = vunpack.c.h.b16 %v83
    %v187 = vunpack.c.l.b16 %v84
    %v188 = vunpack.c.h.b16 %v84
    %v189 = vunpack.c.l.b16 %v85
    %v190 = vunpack.c.h.b16 %v85
    %v191 = vunpack.c.l.b16 %v86
    %v192 = vunpack.c.h.b16 %v86
    %v193 = vunpack.c.l.b16 %v87
    %v194 = vunpack.c.h.b16 %v87
    %v195 = vunpack.c.l.b16 %v88
    %v196 = vunpack.c.h.b16 %v88
    %v197 = vunpack.c.l.b16 %v89
    %v198 = vunpack.c.h.b16 %v89
    %v199 = vunpack.c.l.b16 %v90
    %v200 = vunpack.c.h.b16 %v90
    %v201 = vunpack.c.l.b16 %v91
    %v202 = vunpack.c.h.b16 %v91
    %v203 = vunpack.c.l.b16 %v92
    %v204 = vunpack.c.h.b16 %v92
    %v205 = vunpack.c.l.b16 %v93
    %v206 = vunpack.c.h.b16 %v93
    %v207 = vunpack.c.l.b16 %v94
    %v208 = vunpack.c.h.b16 %v94
    %v209 = vunpack.c.l.b16 %v95
    %v210 = vunpack.c.h.b16 %v95
    %v211 = vunpack.c.l.b16 %v96
    %v212 = vunpack.c.h.b16 %v96
    %v213 = vunpack.c.l.b16 %v97
    %v214 = vunpack.c.h.b16 %v97
    %v215 = vunpack.c.l.b16 %v98
    %v216 = vunpack.c.h.b16 %v98
    %v217 = vunpack.c.l.b16 %v99
    %v218 = vunpack.c.h.b16 %v99
    %v219 = vunpack.c.l.b16 %v100
    %v220 = vunpack.c.h.b16 %v100
    %v221 = vunpack.c.l.b16 %v101
    %v222 = vunpack.c.h.b16 %v101
    %v223 = vunpack.c.l.b16 %v102
    %v224 = vunpack.c.h.b16 %v102
    %v225 = vunpack.c.l.b16 %v103
    %v226 = vunpack.c.h.b16 %v103
    %v227 = vunpack.c.l.b16 %v104
    %v228 = vunpack.c.h.b16 %v104
    %v229 = vunpack.c.l.b16 %v105
    %v230 = vunpack.c.h.b16 %v105
    %v231 = vunpack.c.l.b16 %v106
    %v232 = vunpack.c.h.b16 %v106
    %v233 = vunpack.c.l.b16 %v107
    %v234 = vunpack.c.h.b16 %v107
    %v235 = vunpack.c.l.b16 %v108
    %v236 = vunpack.c.h.b16 %v108
    %v237 = vunpack.c.l.b16 %v109
    %v238 = vunpack.c.h.b16 %v109
    %v239 = vunpack.c.l.b16 %v110
    %v240 = vunpack.c.h.b16 %v110
    %v241 = vpack.c.b16 %v181, %v177
    %v242 = vpack.c.b16 %v182, %v178
    %v243 = vpack.c.b16 %v183, %v179
    %v244 = vpack.c.b16 %v184, %v180
    %v245 = vpack.c.b16 %v189, %v185
    %v246 = vpack.c.b16 %v190, %v186
    %v247 = vpack.c.b16 %v191, %v187
    %v248 = vpack.c.b16 %v192, %v188
    %v249 = vpack.c.b16 %v197, %v193
    %v250 = vpack.c.b16 %v198, %v194
    %v251 = vpack.c.b16 %v199, %v195
    %v252 = vpack.c.b16 %v200, %v196
    %v253 = vpack.c.b16 %v205, %v201
    %v254 = vpack.c.b16 %v206, %v202
    %v255 = vpack.c.b16 %v207, %v203
    %v256 = vpack.c.b16 %v208, %v204
    %v257 = vpack.c.b16 %v213, %v209
    %v258 = vpack.c.b16 %v214, %v210
    %v259 = vpack.c.b16 %v215, %v211
    %v260 = vpack.c.b16 %v216, %v212
    %v261 = vpack.c.b16 %v221, %v217
    %v262 = vpack.c.b16 %v222, %v218
    %v263 = vpack.c.b16 %v223, %v219
    %v264 = vpack.c.b16 %v224, %v220
    %v265 = vpack.c.b16 %v229, %v225
    %v266 = vpack.c.b16 %v230, %v226
    %v267 = vpack.c.b16 %v231, %v227
    %v268 = vpack.c.b16 %v232, %v228
    %v269 = vpack.c.b16 %v237, %v233
    %v270 = vpack.c.b16 %v238, %v234
    %v271 = vpack.c.b16 %v239, %v235
    %v272 = vpack.c.b16 %v240, %v236
    %305 = vmatpush.bf16.msra.mxu0 %v269
    %306 = vmatpush.bf16.msra.mxu0 %v265
    %307 = vmatpush.bf16.msra.mxu0 %v261
    %308 = vmatpush.bf16.msra.mxu0 %v257
    %309 = vmatpush.bf16.msra.mxu0 %v253
    %310 = vmatpush.bf16.msra.mxu0 %v249
    %311 = vmatpush.bf16.msra.mxu0 %v245
    %312 = vmatpush.bf16.msra.mxu0 %v241
    %313 = vmatmul.bf16.gmra.mxu0 %v137
    %v314 = vpop.f32.mrf.mxu0
    %v315 = vadd.f32 %v113, %v314
    %v316 = vpop.f32.mrf.mxu0
    %v317 = vadd.f32 %v113, %v316
    %318 = vmatmul.bf16.gmra.mxu0 %v138
    %v319 = vpop.f32.mrf.mxu0
    %v320 = vadd.f32 %v113, %v319
    %v321 = vpop.f32.mrf.mxu0
    %v322 = vadd.f32 %v113, %v321
    %323 = vmatmul.bf16.gmra.mxu0 %v139
    %v324 = vpop.f32.mrf.mxu0
    %v325 = vadd.f32 %v113, %v324
    %v326 = vpop.f32.mrf.mxu0
    %v327 = vadd.f32 %v113, %v326
    %328 = vmatmul.bf16.gmra.mxu0 %v140
    %v329 = vpop.f32.mrf.mxu0
    %v330 = vadd.f32 %v113, %v329
    %v331 = vpop.f32.mrf.mxu0
    %v332 = vadd.f32 %v113, %v331
    %333 = vdwg.mxu0
    %334 = vmatpush.bf16.msra.mxu0 %v270
    %335 = vmatpush.bf16.msra.mxu0 %v266
    %336 = vmatpush.bf16.msra.mxu0 %v262
    %337 = vmatpush.bf16.msra.mxu0 %v258
    %338 = vmatpush.bf16.msra.mxu0 %v254
    %339 = vmatpush.bf16.msra.mxu0 %v250
    %340 = vmatpush.bf16.msra.mxu0 %v246
    %341 = vmatpush.bf16.msra.mxu0 %v242
    %342 = vmatmul.bf16.gmra.mxu0 %v137
    %v343 = vpop.f32.mrf.mxu0
    %v344 = vadd.f32 %v114, %v343
    %v345 = vpop.f32.mrf.mxu0
    %v346 = vadd.f32 %v114, %v345
    %347 = vmatmul.bf16.gmra.mxu0 %v138
    %v348 = vpop.f32.mrf.mxu0
    %v349 = vadd.f32 %v114, %v348
    %v350 = vpop.f32.mrf.mxu0
    %v351 = vadd.f32 %v114, %v350
    %352 = vmatmul.bf16.gmra.mxu0 %v139
    %v353 = vpop.f32.mrf.mxu0
    %v354 = vadd.f32 %v114, %v353
    %v355 = vpop.f32.mrf.mxu0
    %v356 = vadd.f32 %v114, %v355
    %357 = vmatmul.bf16.gmra.mxu0 %v140
    %v358 = vpop.f32.mrf.mxu0
    %v359 = vadd.f32 %v114, %v358
    %v360 = vpop.f32.mrf.mxu0
    %v361 = vadd.f32 %v114, %v360
    %362 = vdwg.mxu0
    %363 = vmatpush.bf16.msra.mxu0 %v271
    %364 = vmatpush.bf16.msra.mxu0 %v267
    %365 = vmatpush.bf16.msra.mxu0 %v263
    %366 = vmatpush.bf16.msra.mxu0 %v259
    %367 = vmatpush.bf16.msra.mxu0 %v255
    %368 = vmatpush.bf16.msra.mxu0 %v251
    %369 = vmatpush.bf16.msra.mxu0 %v247
    %370 = vmatpush.bf16.msra.mxu0 %v243
    %371 = vmatmul.bf16.gmra.mxu0 %v137
    %v372 = vpop.f32.mrf.mxu0
    %v373 = vadd.f32 %v115, %v372
    %v374 = vpop.f32.mrf.mxu0
    %v375 = vadd.f32 %v115, %v374
    %376 = vmatmul.bf16.gmra.mxu0 %v138
    %v377 = vpop.f32.mrf.mxu0
    %v378 = vadd.f32 %v115, %v377
    %v379 = vpop.f32.mrf.mxu0
    %v380 = vadd.f32 %v115, %v379
    %381 = vmatmul.bf16.gmra.mxu0 %v139
    %v382 = vpop.f32.mrf.mxu0
    %v383 = vadd.f32 %v115, %v382
    %v384 = vpop.f32.mrf.mxu0
    %v385 = vadd.f32 %v115, %v384
    %386 = vmatmul.bf16.gmra.mxu0 %v140
    %v387 = vpop.f32.mrf.mxu0
    %v388 = vadd.f32 %v115, %v387
    %v389 = vpop.f32.mrf.mxu0
    %v390 = vadd.f32 %v115, %v389
    %391 = vdwg.mxu0
    %392 = vmatpush.bf16.msra.mxu0 %v272
    %393 = vmatpush.bf16.msra.mxu0 %v268
    %394 = vmatpush.bf16.msra.mxu0 %v264
    %395 = vmatpush.bf16.msra.mxu0 %v260
    %396 = vmatpush.bf16.msra.mxu0 %v256
    %397 = vmatpush.bf16.msra.mxu0 %v252
    %398 = vmatpush.bf16.msra.mxu0 %v248
    %399 = vmatpush.bf16.msra.mxu0 %v244
    %400 = vmatmul.bf16.gmra.mxu0 %v137
    %v401 = vpop.f32.mrf.mxu0
    %v402 = vadd.f32 %v116, %v401
    %v403 = vpop.f32.mrf.mxu0
    %v404 = vadd.f32 %v116, %v403
    %405 = vmatmul.bf16.gmra.mxu0 %v138
    %v406 = vpop.f32.mrf.mxu0
    %v407 = vadd.f32 %v116, %v406
    %v408 = vpop.f32.mrf.mxu0
    %v409 = vadd.f32 %v116, %v408
    %410 = vmatmul.bf16.gmra.mxu0 %v139
    %v411 = vpop.f32.mrf.mxu0
    %v412 = vadd.f32 %v116, %v411
    %v413 = vpop.f32.mrf.mxu0
    %v414 = vadd.f32 %v116, %v413
    %415 = vmatmul.bf16.gmra.mxu0 %v140
    %v416 = vpop.f32.mrf.mxu0
    %v417 = vadd.f32 %v116, %v416
    %v418 = vpop.f32.mrf.mxu0
    %v419 = vadd.f32 %v116, %v418
    %420 = vdwg.mxu0
    %v421 = vld [vmem:[#allocation4] sm:$0xff]
    %v422 = vld [vmem:[#allocation4 + $0x8] sm:$0xff]
    %v423 = vld [vmem:[#allocation4 + $0x10] sm:$0xff]
    %v424 = vld [vmem:[#allocation4 + $0x18] sm:$0xff]
    %v425 = vld [vmem:[#allocation4 + $0x20] sm:$0xff]
    %v426 = vld [vmem:[#allocation4 + $0x28] sm:$0xff]
    %v427 = vld [vmem:[#allocation4 + $0x30] sm:$0xff]
    %v428 = vld [vmem:[#allocation4 + $0x38] sm:$0xff]
    %v429 = vld [vmem:[#allocation4 + $0x40] sm:$0xff]
    %v430 = vld [vmem:[#allocation4 + $0x48] sm:$0xff]
    %v431 = vld [vmem:[#allocation4 + $0x50] sm:$0xff]
    %v432 = vld [vmem:[#allocation4 + $0x58] sm:$0xff]
    %v433 = vld [vmem:[#allocation4 + $0x60] sm:$0xff]
    %v434 = vld [vmem:[#allocation4 + $0x68] sm:$0xff]
    %v435 = vld [vmem:[#allocation4 + $0x70] sm:$0xff]
    %v436 = vld [vmem:[#allocation4 + $0x78] sm:$0xff]
    %v437 = vld [vmem:[#allocation4 + $0x80] sm:$0xff]
    %v438 = vld [vmem:[#allocation4 + $0x88] sm:$0xff]
    %v439 = vld [vmem:[#allocation4 + $0x90] sm:$0xff]
    %v440 = vld [vmem:[#allocation4 + $0x98] sm:$0xff]
    %v441 = vld [vmem:[#allocation4 + $0xa0] sm:$0xff]
    %v442 = vld [vmem:[#allocation4 + $0xa8] sm:$0xff]
    %v443 = vld [vmem:[#allocation4 + $0xb0] sm:$0xff]
    %v444 = vld [vmem:[#allocation4 + $0xb8] sm:$0xff]
    %v445 = vld [vmem:[#allocation4 + $0xc0] sm:$0xff]
    %v446 = vld [vmem:[#allocation4 + $0xc8] sm:$0xff]
    %v447 = vld [vmem:[#allocation4 + $0xd0] sm:$0xff]
    %v448 = vld [vmem:[#allocation4 + $0xd8] sm:$0xff]
    %v449 = vld [vmem:[#allocation4 + $0xe0] sm:$0xff]
    %v450 = vld [vmem:[#allocation4 + $0xe8] sm:$0xff]
    %v451 = vld [vmem:[#allocation4 + $0xf0] sm:$0xff]
    %v452 = vld [vmem:[#allocation4 + $0xf8] sm:$0xff]
    %v485 = vunpack.c.l.b16 %v421
    %v486 = vunpack.c.h.b16 %v421
    %v487 = vunpack.c.l.b16 %v422
    %v488 = vunpack.c.h.b16 %v422
    %v489 = vunpack.c.l.b16 %v423
    %v490 = vunpack.c.h.b16 %v423
    %v491 = vunpack.c.l.b16 %v424
    %v492 = vunpack.c.h.b16 %v424
    %v493 = vunpack.c.l.b16 %v425
    %v494 = vunpack.c.h.b16 %v425
    %v495 = vunpack.c.l.b16 %v426
    %v496 = vunpack.c.h.b16 %v426
    %v497 = vunpack.c.l.b16 %v427
    %v498 = vunpack.c.h.b16 %v427
    %v499 = vunpack.c.l.b16 %v428
    %v500 = vunpack.c.h.b16 %v428
    %v501 = vunpack.c.l.b16 %v429
    %v502 = vunpack.c.h.b16 %v429
    %v503 = vunpack.c.l.b16 %v430
    %v504 = vunpack.c.h.b16 %v430
    %v505 = vunpack.c.l.b16 %v431
    %v506 = vunpack.c.h.b16 %v431
    %v507 = vunpack.c.l.b16 %v432
    %v508 = vunpack.c.h.b16 %v432
    %v509 = vunpack.c.l.b16 %v433
    %v510 = vunpack.c.h.b16 %v433
    %v511 = vunpack.c.l.b16 %v434
    %v512 = vunpack.c.h.b16 %v434
    %v513 = vunpack.c.l.b16 %v435
    %v514 = vunpack.c.h.b16 %v435
    %v515 = vunpack.c.l.b16 %v436
    %v516 = vunpack.c.h.b16 %v436
    %v517 = vunpack.c.l.b16 %v437
    %v518 = vunpack.c.h.b16 %v437
    %v519 = vunpack.c.l.b16 %v438
    %v520 = vunpack.c.h.b16 %v438
    %v521 = vunpack.c.l.b16 %v439
    %v522 = vunpack.c.h.b16 %v439
    %v523 = vunpack.c.l.b16 %v440
    %v524 = vunpack.c.h.b16 %v440
    %v525 = vunpack.c.l.b16 %v441
    %v526 = vunpack.c.h.b16 %v441
    %v527 = vunpack.c.l.b16 %v442
    %v528 = vunpack.c.h.b16 %v442
    %v529 = vunpack.c.l.b16 %v443
    %v530 = vunpack.c.h.b16 %v443
    %v531 = vunpack.c.l.b16 %v444
    %v532 = vunpack.c.h.b16 %v444
    %v533 = vunpack.c.l.b16 %v445
    %v534 = vunpack.c.h.b16 %v445
    %v535 = vunpack.c.l.b16 %v446
    %v536 = vunpack.c.h.b16 %v446
    %v537 = vunpack.c.l.b16 %v447
    %v538 = vunpack.c.h.b16 %v447
    %v539 = vunpack.c.l.b16 %v448
    %v540 = vunpack.c.h.b16 %v448
    %v541 = vunpack.c.l.b16 %v449
    %v542 = vunpack.c.h.b16 %v449
    %v543 = vunpack.c.l.b16 %v450
    %v544 = vunpack.c.h.b16 %v450
    %v545 = vunpack.c.l.b16 %v451
    %v546 = vunpack.c.h.b16 %v451
    %v547 = vunpack.c.l.b16 %v452
    %v548 = vunpack.c.h.b16 %v452
    %v549 = vpack.c.b16 %v489, %v485
    %v550 = vpack.c.b16 %v490, %v486
    %v551 = vpack.c.b16 %v491, %v487
    %v552 = vpack.c.b16 %v492, %v488
    %v553 = vpack.c.b16 %v497, %v493
    %v554 = vpack.c.b16 %v498, %v494
    %v555 = vpack.c.b16 %v499, %v495
    %v556 = vpack.c.b16 %v500, %v496
    %v557 = vpack.c.b16 %v505, %v501
    %v558 = vpack.c.b16 %v506, %v502
    %v559 = vpack.c.b16 %v507, %v503
    %v560 = vpack.c.b16 %v508, %v504
    %v561 = vpack.c.b16 %v513, %v509
    %v562 = vpack.c.b16 %v514, %v510
    %v563 = vpack.c.b16 %v515, %v511
    %v564 = vpack.c.b16 %v516, %v512
    %v565 = vpack.c.b16 %v521, %v517
    %v566 = vpack.c.b16 %v522, %v518
    %v567 = vpack.c.b16 %v523, %v519
    %v568 = vpack.c.b16 %v524, %v520
    %v569 = vpack.c.b16 %v529, %v525
    %v570 = vpack.c.b16 %v530, %v526
    %v571 = vpack.c.b16 %v531, %v527
    %v572 = vpack.c.b16 %v532, %v528
    %v573 = vpack.c.b16 %v537, %v533
    %v574 = vpack.c.b16 %v538, %v534
    %v575 = vpack.c.b16 %v539, %v535
    %v576 = vpack.c.b16 %v540, %v536
    %v577 = vpack.c.b16 %v545, %v541
    %v578 = vpack.c.b16 %v546, %v542
    %v579 = vpack.c.b16 %v547, %v543
    %v580 = vpack.c.b16 %v548, %v544
    %613 = vmatpush.bf16.msra.mxu0 %v577
    %614 = vmatpush.bf16.msra.mxu0 %v573
    %615 = vmatpush.bf16.msra.mxu0 %v569
    %616 = vmatpush.bf16.msra.mxu0 %v565
    %617 = vmatpush.bf16.msra.mxu0 %v561
    %618 = vmatpush.bf16.msra.mxu0 %v557
    %619 = vmatpush.bf16.msra.mxu0 %v553
    %620 = vmatpush.bf16.msra.mxu0 %v549
    %621 = vmatmul.bf16.gmra.mxu0 0
    %v622 = vpop.f32.mrf.mxu0
    %v623 = vadd.f32 0.0, %v622
    %v624 = vpop.f32.mrf.mxu0
    %625 = vdwg.mxu0
    %626 = vmatpush.bf16.msra.mxu0 %v578
    %627 = vmatpush.bf16.msra.mxu0 %v574
    %628 = vmatpush.bf16.msra.mxu0 %v570
    %629 = vmatpush.bf16.msra.mxu0 %v566
    %630 = vmatpush.bf16.msra.mxu0 %v562
    %631 = vmatpush.bf16.msra.mxu0 %v558
    %632 = vmatpush.bf16.msra.mxu0 %v554
    %633 = vmatpush.bf16.msra.mxu0 %v550
    %634 = vmatmul.bf16.gmra.mxu0 0
    %v635 = vpop.f32.mrf.mxu0
    %v636 = vadd.f32 0.0, %v635
    %v637 = vpop.f32.mrf.mxu0
    %638 = vdwg.mxu0
    %639 = vmatpush.bf16.msra.mxu0 %v579
    %640 = vmatpush.bf16.msra.mxu0 %v575
    %641 = vmatpush.bf16.msra.mxu0 %v571
    %642 = vmatpush.bf16.msra.mxu0 %v567
    %643 = vmatpush.bf16.msra.mxu0 %v563
    %644 = vmatpush.bf16.msra.mxu0 %v559
    %645 = vmatpush.bf16.msra.mxu0 %v555
    %646 = vmatpush.bf16.msra.mxu0 %v551
    %647 = vmatmul.bf16.gmra.mxu0 0
    %v648 = vpop.f32.mrf.mxu0
    %v649 = vadd.f32 0.0, %v648
    %v650 = vpop.f32.mrf.mxu0
    %651 = vdwg.mxu0
    %652 = vmatpush.bf16.msra.mxu0 %v580
    %653 = vmatpush.bf16.msra.mxu0 %v576
    %654 = vmatpush.bf16.msra.mxu0 %v572
    %655 = vmatpush.bf16.msra.mxu0 %v568
    %656 = vmatpush.bf16.msra.mxu0 %v564
    %657 = vmatpush.bf16.msra.mxu0 %v560
    %658 = vmatpush.bf16.msra.mxu0 %v556
    %659 = vmatpush.bf16.msra.mxu0 %v552
    %660 = vmatmul.bf16.gmra.mxu0 0
    %v661 = vpop.f32.mrf.mxu0
    %v662 = vadd.f32 0.0, %v661
    %v663 = vpop.f32.mrf.mxu0
    %664 = vdwg.mxu0
    %v665 = vadd.f32 %v315, %v623
    %v666 = vadd.f32 %v344, %v636
    %v667 = vadd.f32 %v373, %v649
    %v668 = vadd.f32 %v402, %v662
    %v669 = vxor.u32 %v665, 2147483648
    %v670 = vmul.f32 %v669, 1.442695
    %v671 = vpow.pop %v670
    %v672 = vadd.f32 %v671, 1.0
    %v673 = vrcp.pop %v672
    %v674 = vmul.f32 %v672, %v673
    %v675 = vsub.f32 1.0, %v674
    %v676 = vmul.f32 %v673, %v675
    %v677 = vadd.f32 %v673, %v676
    %vm678 = vweird.f32 %v672
    %vm679 = vweird.f32 %v673
    %vm680 = vmor %vm678, %vm679
    %v681 = vsel %vm680, %v673, %v677
    %v682 = vand.u32 2147483647, %v672
    %vm683 = vcmp.eq.f32.partialorder %v682, 8.507059e+37
    %v684 = vand.u32 %v672, 2147483648
    %v685 = vor.u32 1.1754944e-38, %v684
    %v686 = vsel %vm683, %v685, %v681
    %v687 = vmul.f32 1.0, %v686
    %v688 = vxor.u32 %v666, 2147483648
    %v689 = vmul.f32 %v688, 1.442695
    %v690 = vpow.pop %v689
    %v691 = vadd.f32 %v690, 1.0
    %v692 = vrcp.pop %v691
    %v693 = vmul.f32 %v691, %v692
    %v694 = vsub.f32 1.0, %v693
    %v695 = vmul.f32 %v692, %v694
    %v696 = vadd.f32 %v692, %v695
    %vm697 = vweird.f32 %v691
    %vm698 = vweird.f32 %v692
    %vm699 = vmor %vm697, %vm698
    %v700 = vsel %vm699, %v692, %v696
    %v701 = vand.u32 2147483647, %v691
    %vm702 = vcmp.eq.f32.partialorder %v701, 8.507059e+37
    %v703 = vand.u32 %v691, 2147483648
    %v704 = vor.u32 1.1754944e-38, %v703
    %v705 = vsel %vm702, %v704, %v700
    %v706 = vmul.f32 1.0, %v705
    %v707 = vtanh.pop %v667
    %v708 = vxor.u32 %v668, 2147483648
    %v709 = vmul.f32 %v708, 1.442695
    %v710 = vpow.pop %v709
    %v711 = vadd.f32 %v710, 1.0
    %v712 = vrcp.pop %v711
    %v713 = vmul.f32 %v711, %v712
    %v714 = vsub.f32 1.0, %v713
    %v715 = vmul.f32 %v712, %v714
    %v716 = vadd.f32 %v712, %v715
    %vm717 = vweird.f32 %v711
    %vm718 = vweird.f32 %v712
    %vm719 = vmor %vm717, %vm718
    %v720 = vsel %vm719, %v712, %v716
    %v721 = vand.u32 2147483647, %v711
    %vm722 = vcmp.eq.f32.partialorder %v721, 8.507059e+37
    %v723 = vand.u32 %v711, 2147483648
    %v724 = vor.u32 1.1754944e-38, %v723
    %v725 = vsel %vm722, %v724, %v720
    %v726 = vmul.f32 1.0, %v725
    %v727 = vmul.f32 %v706, 0.0
    %v728 = vmul.f32 %v687, %v707
    %v729 = vadd.f32 %v727, %v728
    %v730 = vtanh.pop %v729
    %v731 = vmul.f32 %v726, %v730
    %v732 = vpack.c.bf16 %v731, %v731
    %733 = vmatpush.bf16.msra.mxu0 %v577
    %734 = vmatpush.bf16.msra.mxu0 %v573
    %735 = vmatpush.bf16.msra.mxu0 %v569
    %736 = vmatpush.bf16.msra.mxu0 %v565
    %737 = vmatpush.bf16.msra.mxu0 %v561
    %738 = vmatpush.bf16.msra.mxu0 %v557
    %739 = vmatpush.bf16.msra.mxu0 %v553
    %740 = vmatpush.bf16.msra.mxu0 %v549
    %741 = vmatmul.bf16.gmra.mxu0 %v732
    %v742 = vpop.f32.mrf.mxu0
    %v743 = vadd.f32 0.0, %v742
    %v744 = vpop.f32.mrf.mxu0
    %745 = vdwg.mxu0
    %746 = vmatpush.bf16.msra.mxu0 %v578
    %747 = vmatpush.bf16.msra.mxu0 %v574
    %748 = vmatpush.bf16.msra.mxu0 %v570
    %749 = vmatpush.bf16.msra.mxu0 %v566
    %750 = vmatpush.bf16.msra.mxu0 %v562
    %751 = vmatpush.bf16.msra.mxu0 %v558
    %752 = vmatpush.bf16.msra.mxu0 %v554
    %753 = vmatpush.bf16.msra.mxu0 %v550
    %754 = vmatmul.bf16.gmra.mxu0 %v732
    %v755 = vpop.f32.mrf.mxu0
    %v756 = vadd.f32 0.0, %v755
    %v757 = vpop.f32.mrf.mxu0
    %758 = vdwg.mxu0
    %759 = vmatpush.bf16.msra.mxu0 %v579
    %760 = vmatpush.bf16.msra.mxu0 %v575
    %761 = vmatpush.bf16.msra.mxu0 %v571
    %762 = vmatpush.bf16.msra.mxu0 %v567
    %763 = vmatpush.bf16.msra.mxu0 %v563
    %764 = vmatpush.bf16.msra.mxu0 %v559
    %765 = vmatpush.bf16.msra.mxu0 %v555
    %766 = vmatpush.bf16.msra.mxu0 %v551
    %767 = vmatmul.bf16.gmra.mxu0 %v732
    %v768 = vpop.f32.mrf.mxu0
    %v769 = vadd.f32 0.0, %v768
    %v770 = vpop.f32.mrf.mxu0
    %771 = vdwg.mxu0
    %772 = vmatpush.bf16.msra.mxu0 %v580
    %773 = vmatpush.bf16.msra.mxu0 %v576
    %774 = vmatpush.bf16.msra.mxu0 %v572
    %775 = vmatpush.bf16.msra.mxu0 %v568
    %776 = vmatpush.bf16.msra.mxu0 %v564
    %777 = vmatpush.bf16.msra.mxu0 %v560
    %778 = vmatpush.bf16.msra.mxu0 %v556
    %779 = vmatpush.bf16.msra.mxu0 %v552
    %780 = vmatmul.bf16.gmra.mxu0 %v732
    %v781 = vpop.f32.mrf.mxu0
    %v782 = vadd.f32 0.0, %v781
    %v783 = vpop.f32.mrf.mxu0
    %784 = vdwg.mxu0
    %v785 = vadd.f32 %v317, %v743
    %v786 = vadd.f32 %v346, %v756
    %v787 = vadd.f32 %v375, %v769
    %v788 = vadd.f32 %v404, %v782
    %v789 = vxor.u32 %v785, 2147483648
    %v790 = vmul.f32 %v789, 1.442695
    %v791 = vpow.pop %v790
    %v792 = vadd.f32 %v791, 1.0
    %v793 = vrcp.pop %v792
    %v794 = vmul.f32 %v792, %v793
    %v795 = vsub.f32 1.0, %v794
    %v796 = vmul.f32 %v793, %v795
    %v797 = vadd.f32 %v793, %v796
    %vm798 = vweird.f32 %v792
    %vm799 = vweird.f32 %v793
    %vm800 = vmor %vm798, %vm799
    %v801 = vsel %vm800, %v793, %v797
    %v802 = vand.u32 2147483647, %v792
    %vm803 = vcmp.eq.f32.partialorder %v802, 8.507059e+37
    %v804 = vand.u32 %v792, 2147483648
    %v805 = vor.u32 1.1754944e-38, %v804
    %v806 = vsel %vm803, %v805, %v801
    %v807 = vmul.f32 1.0, %v806
    %v808 = vxor.u32 %v786, 2147483648
    %v809 = vmul.f32 %v808, 1.442695
    %v810 = vpow.pop %v809
    %v811 = vadd.f32 %v810, 1.0
    %v812 = vrcp.pop %v811
    %v813 = vmul.f32 %v811, %v812
    %v814 = vsub.f32 1.0, %v813
    %v815 = vmul.f32 %v812, %v814
    %v816 = vadd.f32 %v812, %v815
    %vm817 = vweird.f32 %v811
    %vm818 = vweird.f32 %v812
    %vm819 = vmor %vm817, %vm818
    %v820 = vsel %vm819, %v812, %v816
    %v821 = vand.u32 2147483647, %v811
    %vm822 = vcmp.eq.f32.partialorder %v821, 8.507059e+37
    %v823 = vand.u32 %v811, 2147483648
    %v824 = vor.u32 1.1754944e-38, %v823
    %v825 = vsel %vm822, %v824, %v820
    %v826 = vmul.f32 1.0, %v825
    %v827 = vtanh.pop %v787
    %v828 = vxor.u32 %v788, 2147483648
    %v829 = vmul.f32 %v828, 1.442695
    %v830 = vpow.pop %v829
    %v831 = vadd.f32 %v830, 1.0
    %v832 = vrcp.pop %v831
    %v833 = vmul.f32 %v831, %v832
    %v834 = vsub.f32 1.0, %v833
    %v835 = vmul.f32 %v832, %v834
    %v836 = vadd.f32 %v832, %v835
    %vm837 = vweird.f32 %v831
    %vm838 = vweird.f32 %v832
    %vm839 = vmor %vm837, %vm838
    %v840 = vsel %vm839, %v832, %v836
    %v841 = vand.u32 2147483647, %v831
    %vm842 = vcmp.eq.f32.partialorder %v841, 8.507059e+37
    %v843 = vand.u32 %v831, 2147483648
    %v844 = vor.u32 1.1754944e-38, %v843
    %v845 = vsel %vm842, %v844, %v840
    %v846 = vmul.f32 1.0, %v845
    %v847 = vmul.f32 %v826, %v729
    %v848 = vmul.f32 %v807, %v827
    %v849 = vadd.f32 %v847, %v848
    %v850 = vtanh.pop %v849
    %v851 = vmul.f32 %v846, %v850
    %v852 = vpack.c.bf16 %v851, %v851
    %853 = vmatpush.bf16.msra.mxu0 %v577
    %854 = vmatpush.bf16.msra.mxu0 %v573
    %855 = vmatpush.bf16.msra.mxu0 %v569
    %856 = vmatpush.bf16.msra.mxu0 %v565
    %857 = vmatpush.bf16.msra.mxu0 %v561
    %858 = vmatpush.bf16.msra.mxu0 %v557
    %859 = vmatpush.bf16.msra.mxu0 %v553
    %860 = vmatpush.bf16.msra.mxu0 %v549
    %861 = vmatmul.bf16.gmra.mxu0 %v852
    %v862 = vpop.f32.mrf.mxu0
    %v863 = vadd.f32 0.0, %v862
    %v864 = vpop.f32.mrf.mxu0
    %865 = vdwg.mxu0
    %866 = vmatpush.bf16.msra.mxu0 %v578
    %867 = vmatpush.bf16.msra.mxu0 %v574
    %868 = vmatpush.bf16.msra.mxu0 %v570
    %869 = vmatpush.bf16.msra.mxu0 %v566
    %870 = vmatpush.bf16.msra.mxu0 %v562
    %871 = vmatpush.bf16.msra.mxu0 %v558
    %872 = vmatpush.bf16.msra.mxu0 %v554
    %873 = vmatpush.bf16.msra.mxu0 %v550
    %874 = vmatmul.bf16.gmra.mxu0 %v852
    %v875 = vpop.f32.mrf.mxu0
    %v876 = vadd.f32 0.0, %v875
    %v877 = vpop.f32.mrf.mxu0
    %878 = vdwg.mxu0
    %879 = vmatpush.bf16.msra.mxu0 %v579
    %880 = vmatpush.bf16.msra.mxu0 %v575
    %881 = vmatpush.bf16.msra.mxu0 %v571
    %882 = vmatpush.bf16.msra.mxu0 %v567
    %883 = vmatpush.bf16.msra.mxu0 %v563
    %884 = vmatpush.bf16.msra.mxu0 %v559
    %885 = vmatpush.bf16.msra.mxu0 %v555
    %886 = vmatpush.bf16.msra.mxu0 %v551
    %887 = vmatmul.bf16.gmra.mxu0 %v852
    %v888 = vpop.f32.mrf.mxu0
    %v889 = vadd.f32 0.0, %v888
    %v890 = vpop.f32.mrf.mxu0
    %891 = vdwg.mxu0
    %892 = vmatpush.bf16.msra.mxu0 %v580
    %893 = vmatpush.bf16.msra.mxu0 %v576
    %894 = vmatpush.bf16.msra.mxu0 %v572
    %895 = vmatpush.bf16.msra.mxu0 %v568
    %896 = vmatpush.bf16.msra.mxu0 %v564
    %897 = vmatpush.bf16.msra.mxu0 %v560
    %898 = vmatpush.bf16.msra.mxu0 %v556
    %899 = vmatpush.bf16.msra.mxu0 %v552
    %900 = vmatmul.bf16.gmra.mxu0 %v852
    %v901 = vpop.f32.mrf.mxu0
    %v902 = vadd.f32 0.0, %v901
    %v903 = vpop.f32.mrf.mxu0
    %904 = vdwg.mxu0
    %v905 = vadd.f32 %v320, %v863
    %v906 = vadd.f32 %v349, %v876
    %v907 = vadd.f32 %v378, %v889
    %v908 = vadd.f32 %v407, %v902
    %v909 = vxor.u32 %v905, 2147483648
    %v910 = vmul.f32 %v909, 1.442695
    %v911 = vpow.pop %v910
    %v912 = vadd.f32 %v911, 1.0
    %v913 = vrcp.pop %v912
    %v914 = vmul.f32 %v912, %v913
    %v915 = vsub.f32 1.0, %v914
    %v916 = vmul.f32 %v913, %v915
    %v917 = vadd.f32 %v913, %v916
    %vm918 = vweird.f32 %v912
    %vm919 = vweird.f32 %v913
    %vm920 = vmor %vm918, %vm919
    %v921 = vsel %vm920, %v913, %v917
    %v922 = vand.u32 2147483647, %v912
    %vm923 = vcmp.eq.f32.partialorder %v922, 8.507059e+37
    %v924 = vand.u32 %v912, 2147483648
    %v925 = vor.u32 1.1754944e-38, %v924
    %v926 = vsel %vm923, %v925, %v921
    %v927 = vmul.f32 1.0, %v926
    %v928 = vxor.u32 %v906, 2147483648
    %v929 = vmul.f32 %v928, 1.442695
    %v930 = vpow.pop %v929
    %v931 = vadd.f32 %v930, 1.0
    %v932 = vrcp.pop %v931
    %v933 = vmul.f32 %v931, %v932
    %v934 = vsub.f32 1.0, %v933
    %v935 = vmul.f32 %v932, %v934
    %v936 = vadd.f32 %v932, %v935
    %vm937 = vweird.f32 %v931
    %vm938 = vweird.f32 %v932
    %vm939 = vmor %vm937, %vm938
    %v940 = vsel %vm939, %v932, %v936
    %v941 = vand.u32 2147483647, %v931
    %vm942 = vcmp.eq.f32.partialorder %v941, 8.507059e+37
    %v943 = vand.u32 %v931, 2147483648
    %v944 = vor.u32 1.1754944e-38, %v943
    %v945 = vsel %vm942, %v944, %v940
    %v946 = vmul.f32 1.0, %v945
    %v947 = vtanh.pop %v907
    %v948 = vxor.u32 %v908, 2147483648
    %v949 = vmul.f32 %v948, 1.442695
    %v950 = vpow.pop %v949
    %v951 = vadd.f32 %v950, 1.0
    %v952 = vrcp.pop %v951
    %v953 = vmul.f32 %v951, %v952
    %v954 = vsub.f32 1.0, %v953
    %v955 = vmul.f32 %v952, %v954
    %v956 = vadd.f32 %v952, %v955
    %vm957 = vweird.f32 %v951
    %vm958 = vweird.f32 %v952
    %vm959 = vmor %vm957, %vm958
    %v960 = vsel %vm959, %v952, %v956
    %v961 = vand.u32 2147483647, %v951
    %vm962 = vcmp.eq.f32.partialorder %v961, 8.507059e+37
    %v963 = vand.u32 %v951, 2147483648
    %v964 = vor.u32 1.1754944e-38, %v963
    %v965 = vsel %vm962, %v964, %v960
    %v966 = vmul.f32 1.0, %v965
    %v967 = vmul.f32 %v946, %v849
    %v968 = vmul.f32 %v927, %v947
    %v969 = vadd.f32 %v967, %v968
    %v970 = vtanh.pop %v969
    %v971 = vmul.f32 %v966, %v970
    %v972 = vpack.c.bf16 %v971, %v971
    %973 = vmatpush.bf16.msra.mxu0 %v577
    %974 = vmatpush.bf16.msra.mxu0 %v573
    %975 = vmatpush.bf16.msra.mxu0 %v569
    %976 = vmatpush.bf16.msra.mxu0 %v565
    %977 = vmatpush.bf16.msra.mxu0 %v561
    %978 = vmatpush.bf16.msra.mxu0 %v557
    %979 = vmatpush.bf16.msra.mxu0 %v553
    %980 = vmatpush.bf16.msra.mxu0 %v549
    %981 = vmatmul.bf16.gmra.mxu0 %v972
    %v982 = vpop.f32.mrf.mxu0
    %v983 = vadd.f32 0.0, %v982
    %v984 = vpop.f32.mrf.mxu0
    %985 = vdwg.mxu0
    %986 = vmatpush.bf16.msra.mxu0 %v578
    %987 = vmatpush.bf16.msra.mxu0 %v574
    %988 = vmatpush.bf16.msra.mxu0 %v570
    %989 = vmatpush.bf16.msra.mxu0 %v566
    %990 = vmatpush.bf16.msra.mxu0 %v562
    %991 = vmatpush.bf16.msra.mxu0 %v558
    %992 = vmatpush.bf16.msra.mxu0 %v554
    %993 = vmatpush.bf16.msra.mxu0 %v550
    %994 = vmatmul.bf16.gmra.mxu0 %v972
    %v995 = vpop.f32.mrf.mxu0
    %v996 = vadd.f32 0.0, %v995
    %v997 = vpop.f32.mrf.mxu0
    %998 = vdwg.mxu0
    %999 = vmatpush.bf16.msra.mxu0 %v579
    %1000 = vmatpush.bf16.msra.mxu0 %v575
    %1001 = vmatpush.bf16.msra.mxu0 %v571
    %1002 = vmatpush.bf16.msra.mxu0 %v567
    %1003 = vmatpush.bf16.msra.mxu0 %v563
    %1004 = vmatpush.bf16.msra.mxu0 %v559
    %1005 = vmatpush.bf16.msra.mxu0 %v555
    %1006 = vmatpush.bf16.msra.mxu0 %v551
    %1007 = vmatmul.bf16.gmra.mxu0 %v972
    %v1008 = vpop.f32.mrf.mxu0
    %v1009 = vadd.f32 0.0, %v1008
    %v1010 = vpop.f32.mrf.mxu0
    %1011 = vdwg.mxu0
    %1012 = vmatpush.bf16.msra.mxu0 %v580
    %1013 = vmatpush.bf16.msra.mxu0 %v576
    %1014 = vmatpush.bf16.msra.mxu0 %v572
    %1015 = vmatpush.bf16.msra.mxu0 %v568
    %1016 = vmatpush.bf16.msra.mxu0 %v564
    %1017 = vmatpush.bf16.msra.mxu0 %v560
    %1018 = vmatpush.bf16.msra.mxu0 %v556
    %1019 = vmatpush.bf16.msra.mxu0 %v552
    %1020 = vmatmul.bf16.gmra.mxu0 %v972
    %v1021 = vpop.f32.mrf.mxu0
    %v1022 = vadd.f32 0.0, %v1021
    %v1023 = vpop.f32.mrf.mxu0
    %1024 = vdwg.mxu0
    %v1025 = vadd.f32 %v322, %v983
    %v1026 = vadd.f32 %v351, %v996
    %v1027 = vadd.f32 %v380, %v1009
    %v1028 = vadd.f32 %v409, %v1022
    %v1029 = vxor.u32 %v1025, 2147483648
    %v1030 = vmul.f32 %v1029, 1.442695
    %v1031 = vpow.pop %v1030
    %v1032 = vadd.f32 %v1031, 1.0
    %v1033 = vrcp.pop %v1032
    %v1034 = vmul.f32 %v1032, %v1033
    %v1035 = vsub.f32 1.0, %v1034
    %v1036 = vmul.f32 %v1033, %v1035
    %v1037 = vadd.f32 %v1033, %v1036
    %vm1038 = vweird.f32 %v1032
    %vm1039 = vweird.f32 %v1033
    %vm1040 = vmor %vm1038, %vm1039
    %v1041 = vsel %vm1040, %v1033, %v1037
    %v1042 = vand.u32 2147483647, %v1032
    %vm1043 = vcmp.eq.f32.partialorder %v1042, 8.507059e+37
    %v1044 = vand.u32 %v1032, 2147483648
    %v1045 = vor.u32 1.1754944e-38, %v1044
    %v1046 = vsel %vm1043, %v1045, %v1041
    %v1047 = vmul.f32 1.0, %v1046
    %v1048 = vxor.u32 %v1026, 2147483648
    %v1049 = vmul.f32 %v1048, 1.442695
    %v1050 = vpow.pop %v1049
    %v1051 = vadd.f32 %v1050, 1.0
    %v1052 = vrcp.pop %v1051
    %v1053 = vmul.f32 %v1051, %v1052
    %v1054 = vsub.f32 1.0, %v1053
    %v1055 = vmul.f32 %v1052, %v1054
    %v1056 = vadd.f32 %v1052, %v1055
    %vm1057 = vweird.f32 %v1051
    %vm1058 = vweird.f32 %v1052
    %vm1059 = vmor %vm1057, %vm1058
    %v1060 = vsel %vm1059, %v1052, %v1056
    %v1061 = vand.u32 2147483647, %v1051
    %vm1062 = vcmp.eq.f32.partialorder %v1061, 8.507059e+37
    %v1063 = vand.u32 %v1051, 2147483648
    %v1064 = vor.u32 1.1754944e-38, %v1063
    %v1065 = vsel %vm1062, %v1064, %v1060
    %v1066 = vmul.f32 1.0, %v1065
    %v1067 = vtanh.pop %v1027
    %v1068 = vxor.u32 %v1028, 2147483648
    %v1069 = vmul.f32 %v1068, 1.442695
    %v1070 = vpow.pop %v1069
    %v1071 = vadd.f32 %v1070, 1.0
    %v1072 = vrcp.pop %v1071
    %v1073 = vmul.f32 %v1071, %v1072
    %v1074 = vsub.f32 1.0, %v1073
    %v1075 = vmul.f32 %v1072, %v1074
    %v1076 = vadd.f32 %v1072, %v1075
    %vm1077 = vweird.f32 %v1071
    %vm1078 = vweird.f32 %v1072
    %vm1079 = vmor %vm1077, %vm1078
    %v1080 = vsel %vm1079, %v1072, %v1076
    %v1081 = vand.u32 2147483647, %v1071
    %vm1082 = vcmp.eq.f32.partialorder %v1081, 8.507059e+37
    %v1083 = vand.u32 %v1071, 2147483648
    %v1084 = vor.u32 1.1754944e-38, %v1083
    %v1085 = vsel %vm1082, %v1084, %v1080
    %v1086 = vmul.f32 1.0, %v1085
    %v1087 = vmul.f32 %v1066, %v969
    %v1088 = vmul.f32 %v1047, %v1067
    %v1089 = vadd.f32 %v1087, %v1088
    %v1090 = vtanh.pop %v1089
    %v1091 = vmul.f32 %v1086, %v1090
    %v1092 = vpack.c.bf16 %v1091, %v1091
    %1093 = vmatpush.bf16.msra.mxu0 %v577
    %1094 = vmatpush.bf16.msra.mxu0 %v573
    %1095 = vmatpush.bf16.msra.mxu0 %v569
    %1096 = vmatpush.bf16.msra.mxu0 %v565
    %1097 = vmatpush.bf16.msra.mxu0 %v561
    %1098 = vmatpush.bf16.msra.mxu0 %v557
    %1099 = vmatpush.bf16.msra.mxu0 %v553
    %1100 = vmatpush.bf16.msra.mxu0 %v549
    %1101 = vmatmul.bf16.gmra.mxu0 %v1092
    %v1102 = vpop.f32.mrf.mxu0
    %v1103 = vadd.f32 0.0, %v1102
    %v1104 = vpop.f32.mrf.mxu0
    %1105 = vdwg.mxu0
    %1106 = vmatpush.bf16.msra.mxu0 %v578
    %1107 = vmatpush.bf16.msra.mxu0 %v574
    %1108 = vmatpush.bf16.msra.mxu0 %v570
    %1109 = vmatpush.bf16.msra.mxu0 %v566
    %1110 = vmatpush.bf16.msra.mxu0 %v562
    %1111 = vmatpush.bf16.msra.mxu0 %v558
    %1112 = vmatpush.bf16.msra.mxu0 %v554
    %1113 = vmatpush.bf16.msra.mxu0 %v550
    %1114 = vmatmul.bf16.gmra.mxu0 %v1092
    %v1115 = vpop.f32.mrf.mxu0
    %v1116 = vadd.f32 0.0, %v1115
    %v1117 = vpop.f32.mrf.mxu0
    %1118 = vdwg.mxu0
    %1119 = vmatpush.bf16.msra.mxu0 %v579
    %1120 = vmatpush.bf16.msra.mxu0 %v575
    %1121 = vmatpush.bf16.msra.mxu0 %v571
    %1122 = vmatpush.bf16.msra.mxu0 %v567
    %1123 = vmatpush.bf16.msra.mxu0 %v563
    %1124 = vmatpush.bf16.msra.mxu0 %v559
    %1125 = vmatpush.bf16.msra.mxu0 %v555
    %1126 = vmatpush.bf16.msra.mxu0 %v551
    %1127 = vmatmul.bf16.gmra.mxu0 %v1092
    %v1128 = vpop.f32.mrf.mxu0
    %v1129 = vadd.f32 0.0, %v1128
    %v1130 = vpop.f32.mrf.mxu0
    %1131 = vdwg.mxu0
    %1132 = vmatpush.bf16.msra.mxu0 %v580
    %1133 = vmatpush.bf16.msra.mxu0 %v576
    %1134 = vmatpush.bf16.msra.mxu0 %v572
    %1135 = vmatpush.bf16.msra.mxu0 %v568
    %1136 = vmatpush.bf16.msra.mxu0 %v564
    %1137 = vmatpush.bf16.msra.mxu0 %v560
    %1138 = vmatpush.bf16.msra.mxu0 %v556
    %1139 = vmatpush.bf16.msra.mxu0 %v552
    %1140 = vmatmul.bf16.gmra.mxu0 %v1092
    %v1141 = vpop.f32.mrf.mxu0
    %v1142 = vadd.f32 0.0, %v1141
    %v1143 = vpop.f32.mrf.mxu0
    %1144 = vdwg.mxu0
    %v1145 = vadd.f32 %v325, %v1103
    %v1146 = vadd.f32 %v354, %v1116
    %v1147 = vadd.f32 %v383, %v1129
    %v1148 = vadd.f32 %v412, %v1142
    %v1149 = vxor.u32 %v1145, 2147483648
    %v1150 = vmul.f32 %v1149, 1.442695
    %v1151 = vpow.pop %v1150
    %v1152 = vadd.f32 %v1151, 1.0
    %v1153 = vrcp.pop %v1152
    %v1154 = vmul.f32 %v1152, %v1153
    %v1155 = vsub.f32 1.0, %v1154
    %v1156 = vmul.f32 %v1153, %v1155
    %v1157 = vadd.f32 %v1153, %v1156
    %vm1158 = vweird.f32 %v1152
    %vm1159 = vweird.f32 %v1153
    %vm1160 = vmor %vm1158, %vm1159
    %v1161 = vsel %vm1160, %v1153, %v1157
    %v1162 = vand.u32 2147483647, %v1152
    %vm1163 = vcmp.eq.f32.partialorder %v1162, 8.507059e+37
    %v1164 = vand.u32 %v1152, 2147483648
    %v1165 = vor.u32 1.1754944e-38, %v1164
    %v1166 = vsel %vm1163, %v1165, %v1161
    %v1167 = vmul.f32 1.0, %v1166
    %v1168 = vxor.u32 %v1146, 2147483648
    %v1169 = vmul.f32 %v1168, 1.442695
    %v1170 = vpow.pop %v1169
    %v1171 = vadd.f32 %v1170, 1.0
    %v1172 = vrcp.pop %v1171
    %v1173 = vmul.f32 %v1171, %v1172
    %v1174 = vsub.f32 1.0, %v1173
    %v1175 = vmul.f32 %v1172, %v1174
    %v1176 = vadd.f32 %v1172, %v1175
    %vm1177 = vweird.f32 %v1171
    %vm1178 = vweird.f32 %v1172
    %vm1179 = vmor %vm1177, %vm1178
    %v1180 = vsel %vm1179, %v1172, %v1176
    %v1181 = vand.u32 2147483647, %v1171
    %vm1182 = vcmp.eq.f32.partialorder %v1181, 8.507059e+37
    %v1183 = vand.u32 %v1171, 2147483648
    %v1184 = vor.u32 1.1754944e-38, %v1183
    %v1185 = vsel %vm1182, %v1184, %v1180
    %v1186 = vmul.f32 1.0, %v1185
    %v1187 = vtanh.pop %v1147
    %v1188 = vxor.u32 %v1148, 2147483648
    %v1189 = vmul.f32 %v1188, 1.442695
    %v1190 = vpow.pop %v1189
    %v1191 = vadd.f32 %v1190, 1.0
    %v1192 = vrcp.pop %v1191
    %v1193 = vmul.f32 %v1191, %v1192
    %v1194 = vsub.f32 1.0, %v1193
    %v1195 = vmul.f32 %v1192, %v1194
    %v1196 = vadd.f32 %v1192, %v1195
    %vm1197 = vweird.f32 %v1191
    %vm1198 = vweird.f32 %v1192
    %vm1199 = vmor %vm1197, %vm1198
    %v1200 = vsel %vm1199, %v1192, %v1196
    %v1201 = vand.u32 2147483647, %v1191
    %vm1202 = vcmp.eq.f32.partialorder %v1201, 8.507059e+37
    %v1203 = vand.u32 %v1191, 2147483648
    %v1204 = vor.u32 1.1754944e-38, %v1203
    %v1205 = vsel %vm1202, %v1204, %v1200
    %v1206 = vmul.f32 1.0, %v1205
    %v1207 = vmul.f32 %v1186, %v1089
    %v1208 = vmul.f32 %v1167, %v1187
    %v1209 = vadd.f32 %v1207, %v1208
    %v1210 = vtanh.pop %v1209
    %v1211 = vmul.f32 %v1206, %v1210
    %v1212 = vpack.c.bf16 %v1211, %v1211
    %1213 = vmatpush.bf16.msra.mxu0 %v577
    %1214 = vmatpush.bf16.msra.mxu0 %v573
    %1215 = vmatpush.bf16.msra.mxu0 %v569
    %1216 = vmatpush.bf16.msra.mxu0 %v565
    %1217 = vmatpush.bf16.msra.mxu0 %v561
    %1218 = vmatpush.bf16.msra.mxu0 %v557
    %1219 = vmatpush.bf16.msra.mxu0 %v553
    %1220 = vmatpush.bf16.msra.mxu0 %v549
    %1221 = vmatmul.bf16.gmra.mxu0 %v1212
    %v1222 = vpop.f32.mrf.mxu0
    %v1223 = vadd.f32 0.0, %v1222
    %v1224 = vpop.f32.mrf.mxu0
    %1225 = vdwg.mxu0
    %1226 = vmatpush.bf16.msra.mxu0 %v578
    %1227 = vmatpush.bf16.msra.mxu0 %v574
    %1228 = vmatpush.bf16.msra.mxu0 %v570
    %1229 = vmatpush.bf16.msra.mxu0 %v566
    %1230 = vmatpush.bf16.msra.mxu0 %v562
    %1231 = vmatpush.bf16.msra.mxu0 %v558
    %1232 = vmatpush.bf16.msra.mxu0 %v554
    %1233 = vmatpush.bf16.msra.mxu0 %v550
    %1234 = vmatmul.bf16.gmra.mxu0 %v1212
    %v1235 = vpop.f32.mrf.mxu0
    %v1236 = vadd.f32 0.0, %v1235
    %v1237 = vpop.f32.mrf.mxu0
    %1238 = vdwg.mxu0
    %1239 = vmatpush.bf16.msra.mxu0 %v579
    %1240 = vmatpush.bf16.msra.mxu0 %v575
    %1241 = vmatpush.bf16.msra.mxu0 %v571
    %1242 = vmatpush.bf16.msra.mxu0 %v567
    %1243 = vmatpush.bf16.msra.mxu0 %v563
    %1244 = vmatpush.bf16.msra.mxu0 %v559
    %1245 = vmatpush.bf16.msra.mxu0 %v555
    %1246 = vmatpush.bf16.msra.mxu0 %v551
    %1247 = vmatmul.bf16.gmra.mxu0 %v1212
    %v1248 = vpop.f32.mrf.mxu0
    %v1249 = vadd.f32 0.0, %v1248
    %v1250 = vpop.f32.mrf.mxu0
    %1251 = vdwg.mxu0
    %1252 = vmatpush.bf16.msra.mxu0 %v580
    %1253 = vmatpush.bf16.msra.mxu0 %v576
    %1254 = vmatpush.bf16.msra.mxu0 %v572
    %1255 = vmatpush.bf16.msra.mxu0 %v568
    %1256 = vmatpush.bf16.msra.mxu0 %v564
    %1257 = vmatpush.bf16.msra.mxu0 %v560
    %1258 = vmatpush.bf16.msra.mxu0 %v556
    %1259 = vmatpush.bf16.msra.mxu0 %v552
    %1260 = vmatmul.bf16.gmra.mxu0 %v1212
    %v1261 = vpop.f32.mrf.mxu0
    %v1262 = vadd.f32 0.0, %v1261
    %v1263 = vpop.f32.mrf.mxu0
    %1264 = vdwg.mxu0
    %v1265 = vadd.f32 %v327, %v1223
    %v1266 = vadd.f32 %v356, %v1236
    %v1267 = vadd.f32 %v385, %v1249
    %v1268 = vadd.f32 %v414, %v1262
    %v1269 = vxor.u32 %v1265, 2147483648
    %v1270 = vmul.f32 %v1269, 1.442695
    %v1271 = vpow.pop %v1270
    %v1272 = vadd.f32 %v1271, 1.0
    %v1273 = vrcp.pop %v1272
    %v1274 = vmul.f32 %v1272, %v1273
    %v1275 = vsub.f32 1.0, %v1274
    %v1276 = vmul.f32 %v1273, %v1275
    %v1277 = vadd.f32 %v1273, %v1276
    %vm1278 = vweird.f32 %v1272
    %vm1279 = vweird.f32 %v1273
    %vm1280 = vmor %vm1278, %vm1279
    %v1281 = vsel %vm1280, %v1273, %v1277
    %v1282 = vand.u32 2147483647, %v1272
    %vm1283 = vcmp.eq.f32.partialorder %v1282, 8.507059e+37
    %v1284 = vand.u32 %v1272, 2147483648
    %v1285 = vor.u32 1.1754944e-38, %v1284
    %v1286 = vsel %vm1283, %v1285, %v1281
    %v1287 = vmul.f32 1.0, %v1286
    %v1288 = vxor.u32 %v1266, 2147483648
    %v1289 = vmul.f32 %v1288, 1.442695
    %v1290 = vpow.pop %v1289
    %v1291 = vadd.f32 %v1290, 1.0
    %v1292 = vrcp.pop %v1291
    %v1293 = vmul.f32 %v1291, %v1292
    %v1294 = vsub.f32 1.0, %v1293
    %v1295 = vmul.f32 %v1292, %v1294
    %v1296 = vadd.f32 %v1292, %v1295
    %vm1297 = vweird.f32 %v1291
    %vm1298 = vweird.f32 %v1292
    %vm1299 = vmor %vm1297, %vm1298
    %v1300 = vsel %vm1299, %v1292, %v1296
    %v1301 = vand.u32 2147483647, %v1291
    %vm1302 = vcmp.eq.f32.partialorder %v1301, 8.507059e+37
    %v1303 = vand.u32 %v1291, 2147483648
    %v1304 = vor.u32 1.1754944e-38, %v1303
    %v1305 = vsel %vm1302, %v1304, %v1300
    %v1306 = vmul.f32 1.0, %v1305
    %v1307 = vtanh.pop %v1267
    %v1308 = vxor.u32 %v1268, 2147483648
    %v1309 = vmul.f32 %v1308, 1.442695
    %v1310 = vpow.pop %v1309
    %v1311 = vadd.f32 %v1310, 1.0
    %v1312 = vrcp.pop %v1311
    %v1313 = vmul.f32 %v1311, %v1312
    %v1314 = vsub.f32 1.0, %v1313
    %v1315 = vmul.f32 %v1312, %v1314
    %v1316 = vadd.f32 %v1312, %v1315
    %vm1317 = vweird.f32 %v1311
    %vm1318 = vweird.f32 %v1312
    %vm1319 = vmor %vm1317, %vm1318
    %v1320 = vsel %vm1319, %v1312, %v1316
    %v1321 = vand.u32 2147483647, %v1311
    %vm1322 = vcmp.eq.f32.partialorder %v1321, 8.507059e+37
    %v1323 = vand.u32 %v1311, 2147483648
    %v1324 = vor.u32 1.1754944e-38, %v1323
    %v1325 = vsel %vm1322, %v1324, %v1320
    %v1326 = vmul.f32 1.0, %v1325
    %v1327 = vmul.f32 %v1306, %v1209
    %v1328 = vmul.f32 %v1287, %v1307
    %v1329 = vadd.f32 %v1327, %v1328
    %v1330 = vtanh.pop %v1329
    %v1331 = vmul.f32 %v1326, %v1330
    %v1332 = vpack.c.bf16 %v1331, %v1331
    %1333 = vmatpush.bf16.msra.mxu0 %v577
    %1334 = vmatpush.bf16.msra.mxu0 %v573
    %1335 = vmatpush.bf16.msra.mxu0 %v569
    %1336 = vmatpush.bf16.msra.mxu0 %v565
    %1337 = vmatpush.bf16.msra.mxu0 %v561
    %1338 = vmatpush.bf16.msra.mxu0 %v557
    %1339 = vmatpush.bf16.msra.mxu0 %v553
    %1340 = vmatpush.bf16.msra.mxu0 %v549
    %1341 = vmatmul.bf16.gmra.mxu0 %v1332
    %v1342 = vpop.f32.mrf.mxu0
    %v1343 = vadd.f32 0.0, %v1342
    %v1344 = vpop.f32.mrf.mxu0
    %1345 = vdwg.mxu0
    %1346 = vmatpush.bf16.msra.mxu0 %v578
    %1347 = vmatpush.bf16.msra.mxu0 %v574
    %1348 = vmatpush.bf16.msra.mxu0 %v570
    %1349 = vmatpush.bf16.msra.mxu0 %v566
    %1350 = vmatpush.bf16.msra.mxu0 %v562
    %1351 = vmatpush.bf16.msra.mxu0 %v558
    %1352 = vmatpush.bf16.msra.mxu0 %v554
    %1353 = vmatpush.bf16.msra.mxu0 %v550
    %1354 = vmatmul.bf16.gmra.mxu0 %v1332
    %v1355 = vpop.f32.mrf.mxu0
    %v1356 = vadd.f32 0.0, %v1355
    %v1357 = vpop.f32.mrf.mxu0
    %1358 = vdwg.mxu0
    %1359 = vmatpush.bf16.msra.mxu0 %v579
    %1360 = vmatpush.bf16.msra.mxu0 %v575
    %1361 = vmatpush.bf16.msra.mxu0 %v571
    %1362 = vmatpush.bf16.msra.mxu0 %v567
    %1363 = vmatpush.bf16.msra.mxu0 %v563
    %1364 = vmatpush.bf16.msra.mxu0 %v559
    %1365 = vmatpush.bf16.msra.mxu0 %v555
    %1366 = vmatpush.bf16.msra.mxu0 %v551
    %1367 = vmatmul.bf16.gmra.mxu0 %v1332
    %v1368 = vpop.f32.mrf.mxu0
    %v1369 = vadd.f32 0.0, %v1368
    %v1370 = vpop.f32.mrf.mxu0
    %1371 = vdwg.mxu0
    %1372 = vmatpush.bf16.msra.mxu0 %v580
    %1373 = vmatpush.bf16.msra.mxu0 %v576
    %1374 = vmatpush.bf16.msra.mxu0 %v572
    %1375 = vmatpush.bf16.msra.mxu0 %v568
    %1376 = vmatpush.bf16.msra.mxu0 %v564
    %1377 = vmatpush.bf16.msra.mxu0 %v560
    %1378 = vmatpush.bf16.msra.mxu0 %v556
    %1379 = vmatpush.bf16.msra.mxu0 %v552
    %1380 = vmatmul.bf16.gmra.mxu0 %v1332
    %v1381 = vpop.f32.mrf.mxu0
    %v1382 = vadd.f32 0.0, %v1381
    %v1383 = vpop.f32.mrf.mxu0
    %1384 = vdwg.mxu0
    %v1385 = vadd.f32 %v330, %v1343
    %v1386 = vadd.f32 %v359, %v1356
    %v1387 = vadd.f32 %v388, %v1369
    %v1388 = vadd.f32 %v417, %v1382
    %v1389 = vxor.u32 %v1385, 2147483648
    %v1390 = vmul.f32 %v1389, 1.442695
    %v1391 = vpow.pop %v1390
    %v1392 = vadd.f32 %v1391, 1.0
    %v1393 = vrcp.pop %v1392
    %v1394 = vmul.f32 %v1392, %v1393
    %v1395 = vsub.f32 1.0, %v1394
    %v1396 = vmul.f32 %v1393, %v1395
    %v1397 = vadd.f32 %v1393, %v1396
    %vm1398 = vweird.f32 %v1392
    %vm1399 = vweird.f32 %v1393
    %vm1400 = vmor %vm1398, %vm1399
    %v1401 = vsel %vm1400, %v1393, %v1397
    %v1402 = vand.u32 2147483647, %v1392
    %vm1403 = vcmp.eq.f32.partialorder %v1402, 8.507059e+37
    %v1404 = vand.u32 %v1392, 2147483648
    %v1405 = vor.u32 1.1754944e-38, %v1404
    %v1406 = vsel %vm1403, %v1405, %v1401
    %v1407 = vmul.f32 1.0, %v1406
    %v1408 = vxor.u32 %v1386, 2147483648
    %v1409 = vmul.f32 %v1408, 1.442695
    %v1410 = vpow.pop %v1409
    %v1411 = vadd.f32 %v1410, 1.0
    %v1412 = vrcp.pop %v1411
    %v1413 = vmul.f32 %v1411, %v1412
    %v1414 = vsub.f32 1.0, %v1413
    %v1415 = vmul.f32 %v1412, %v1414
    %v1416 = vadd.f32 %v1412, %v1415
    %vm1417 = vweird.f32 %v1411
    %vm1418 = vweird.f32 %v1412
    %vm1419 = vmor %vm1417, %vm1418
    %v1420 = vsel %vm1419, %v1412, %v1416
    %v1421 = vand.u32 2147483647, %v1411
    %vm1422 = vcmp.eq.f32.partialorder %v1421, 8.507059e+37
    %v1423 = vand.u32 %v1411, 2147483648
    %v1424 = vor.u32 1.1754944e-38, %v1423
    %v1425 = vsel %vm1422, %v1424, %v1420
    %v1426 = vmul.f32 1.0, %v1425
    %v1427 = vtanh.pop %v1387
    %v1428 = vxor.u32 %v1388, 2147483648
    %v1429 = vmul.f32 %v1428, 1.442695
    %v1430 = vpow.pop %v1429
    %v1431 = vadd.f32 %v1430, 1.0
    %v1432 = vrcp.pop %v1431
    %v1433 = vmul.f32 %v1431, %v1432
    %v1434 = vsub.f32 1.0, %v1433
    %v1435 = vmul.f32 %v1432, %v1434
    %v1436 = vadd.f32 %v1432, %v1435
    %vm1437 = vweird.f32 %v1431
    %vm1438 = vweird.f32 %v1432
    %vm1439 = vmor %vm1437, %vm1438
    %v1440 = vsel %vm1439, %v1432, %v1436
    %v1441 = vand.u32 2147483647, %v1431
    %vm1442 = vcmp.eq.f32.partialorder %v1441, 8.507059e+37
    %v1443 = vand.u32 %v1431, 2147483648
    %v1444 = vor.u32 1.1754944e-38, %v1443
    %v1445 = vsel %vm1442, %v1444, %v1440
    %v1446 = vmul.f32 1.0, %v1445
    %v1447 = vmul.f32 %v1426, %v1329
    %v1448 = vmul.f32 %v1407, %v1427
    %v1449 = vadd.f32 %v1447, %v1448
    %v1450 = vtanh.pop %v1449
    %v1451 = vmul.f32 %v1446, %v1450
    %v1452 = vpack.c.bf16 %v1451, %v1451
    %1453 = vmatpush.bf16.msra.mxu0 %v577
    %1454 = vmatpush.bf16.msra.mxu0 %v573
    %1455 = vmatpush.bf16.msra.mxu0 %v569
    %1456 = vmatpush.bf16.msra.mxu0 %v565
    %1457 = vmatpush.bf16.msra.mxu0 %v561
    %1458 = vmatpush.bf16.msra.mxu0 %v557
    %1459 = vmatpush.bf16.msra.mxu0 %v553
    %1460 = vmatpush.bf16.msra.mxu0 %v549
    %1461 = vmatmul.bf16.gmra.mxu0 %v1452
    %v1462 = vpop.f32.mrf.mxu0
    %v1463 = vadd.f32 0.0, %v1462
    %v1464 = vpop.f32.mrf.mxu0
    %1465 = vdwg.mxu0
    %1466 = vmatpush.bf16.msra.mxu0 %v578
    %1467 = vmatpush.bf16.msra.mxu0 %v574
    %1468 = vmatpush.bf16.msra.mxu0 %v570
    %1469 = vmatpush.bf16.msra.mxu0 %v566
    %1470 = vmatpush.bf16.msra.mxu0 %v562
    %1471 = vmatpush.bf16.msra.mxu0 %v558
    %1472 = vmatpush.bf16.msra.mxu0 %v554
    %1473 = vmatpush.bf16.msra.mxu0 %v550
    %1474 = vmatmul.bf16.gmra.mxu0 %v1452
    %v1475 = vpop.f32.mrf.mxu0
    %v1476 = vadd.f32 0.0, %v1475
    %v1477 = vpop.f32.mrf.mxu0
    %1478 = vdwg.mxu0
    %1479 = vmatpush.bf16.msra.mxu0 %v579
    %1480 = vmatpush.bf16.msra.mxu0 %v575
    %1481 = vmatpush.bf16.msra.mxu0 %v571
    %1482 = vmatpush.bf16.msra.mxu0 %v567
    %1483 = vmatpush.bf16.msra.mxu0 %v563
    %1484 = vmatpush.bf16.msra.mxu0 %v559
    %1485 = vmatpush.bf16.msra.mxu0 %v555
    %1486 = vmatpush.bf16.msra.mxu0 %v551
    %1487 = vmatmul.bf16.gmra.mxu0 %v1452
    %v1488 = vpop.f32.mrf.mxu0
    %v1489 = vadd.f32 0.0, %v1488
    %v1490 = vpop.f32.mrf.mxu0
    %1491 = vdwg.mxu0
    %1492 = vmatpush.bf16.msra.mxu0 %v580
    %1493 = vmatpush.bf16.msra.mxu0 %v576
    %1494 = vmatpush.bf16.msra.mxu0 %v572
    %1495 = vmatpush.bf16.msra.mxu0 %v568
    %1496 = vmatpush.bf16.msra.mxu0 %v564
    %1497 = vmatpush.bf16.msra.mxu0 %v560
    %1498 = vmatpush.bf16.msra.mxu0 %v556
    %1499 = vmatpush.bf16.msra.mxu0 %v552
    %1500 = vmatmul.bf16.gmra.mxu0 %v1452
    %v1501 = vpop.f32.mrf.mxu0
    %v1502 = vadd.f32 0.0, %v1501
    %v1503 = vpop.f32.mrf.mxu0
    %1504 = vdwg.mxu0
    %v1505 = vadd.f32 %v332, %v1463
    %v1506 = vadd.f32 %v361, %v1476
    %v1507 = vadd.f32 %v390, %v1489
    %v1508 = vadd.f32 %v419, %v1502
    %v1509 = vxor.u32 %v1505, 2147483648
    %v1510 = vmul.f32 %v1509, 1.442695
    %v1511 = vpow.pop %v1510
    %v1512 = vadd.f32 %v1511, 1.0
    %v1513 = vrcp.pop %v1512
    %v1514 = vmul.f32 %v1512, %v1513
    %v1515 = vsub.f32 1.0, %v1514
    %v1516 = vmul.f32 %v1513, %v1515
    %v1517 = vadd.f32 %v1513, %v1516
    %vm1518 = vweird.f32 %v1512
    %vm1519 = vweird.f32 %v1513
    %vm1520 = vmor %vm1518, %vm1519
    %v1521 = vsel %vm1520, %v1513, %v1517
    %v1522 = vand.u32 2147483647, %v1512
    %vm1523 = vcmp.eq.f32.partialorder %v1522, 8.507059e+37
    %v1524 = vand.u32 %v1512, 2147483648
    %v1525 = vor.u32 1.1754944e-38, %v1524
    %v1526 = vsel %vm1523, %v1525, %v1521
    %v1527 = vmul.f32 1.0, %v1526
    %v1528 = vxor.u32 %v1506, 2147483648
    %v1529 = vmul.f32 %v1528, 1.442695
    %v1530 = vpow.pop %v1529
    %v1531 = vadd.f32 %v1530, 1.0
    %v1532 = vrcp.pop %v1531
    %v1533 = vmul.f32 %v1531, %v1532
    %v1534 = vsub.f32 1.0, %v1533
    %v1535 = vmul.f32 %v1532, %v1534
    %v1536 = vadd.f32 %v1532, %v1535
    %vm1537 = vweird.f32 %v1531
    %vm1538 = vweird.f32 %v1532
    %vm1539 = vmor %vm1537, %vm1538
    %v1540 = vsel %vm1539, %v1532, %v1536
    %v1541 = vand.u32 2147483647, %v1531
    %vm1542 = vcmp.eq.f32.partialorder %v1541, 8.507059e+37
    %v1543 = vand.u32 %v1531, 2147483648
    %v1544 = vor.u32 1.1754944e-38, %v1543
    %v1545 = vsel %vm1542, %v1544, %v1540
    %v1546 = vmul.f32 1.0, %v1545
    %v1547 = vtanh.pop %v1507
    %v1548 = vxor.u32 %v1508, 2147483648
    %v1549 = vmul.f32 %v1548, 1.442695
    %v1550 = vpow.pop %v1549
    %v1551 = vadd.f32 %v1550, 1.0
    %v1552 = vrcp.pop %v1551
    %v1553 = vmul.f32 %v1551, %v1552
    %v1554 = vsub.f32 1.0, %v1553
    %v1555 = vmul.f32 %v1552, %v1554
    %v1556 = vadd.f32 %v1552, %v1555
    %vm1557 = vweird.f32 %v1551
    %vm1558 = vweird.f32 %v1552
    %vm1559 = vmor %vm1557, %vm1558
    %v1560 = vsel %vm1559, %v1552, %v1556
    %v1561 = vand.u32 2147483647, %v1551
    %vm1562 = vcmp.eq.f32.partialorder %v1561, 8.507059e+37
    %v1563 = vand.u32 %v1551, 2147483648
    %v1564 = vor.u32 1.1754944e-38, %v1563
    %v1565 = vsel %vm1562, %v1564, %v1560
    %v1566 = vmul.f32 1.0, %v1565
    %v1567 = vmul.f32 %v1546, %v1449
    %v1568 = vmul.f32 %v1527, %v1547
    %v1569 = vadd.f32 %v1567, %v1568
    %v1570 = vtanh.pop %v1569
    %v1571 = vmul.f32 %v1566, %v1570
    %v1572 = vpack.c.bf16 %v1571, %v1571
    %v1573 = vld [vmem:[#allocation6] sm:$0xf]
    %v1574 = vld [vmem:[#allocation6 + $0x4] sm:$0xf]
    %v1575 = vld [vmem:[#allocation6 + $0x8] sm:$0xf]
    %v1576 = vld [vmem:[#allocation6 + $0xc] sm:$0xf]
    %v1577 = vld [vmem:[#allocation6 + $0x10] sm:$0xf]
    %v1578 = vld [vmem:[#allocation6 + $0x14] sm:$0xf]
    %v1579 = vld [vmem:[#allocation6 + $0x18] sm:$0xf]
    %v1580 = vld [vmem:[#allocation6 + $0x1c] sm:$0xf]
    %v1581 = vld [vmem:[#allocation6 + $0x20] sm:$0xf]
    %v1582 = vld [vmem:[#allocation6 + $0x24] sm:$0xf]
    %v1583 = vld [vmem:[#allocation6 + $0x28] sm:$0xf]
    %v1584 = vld [vmem:[#allocation6 + $0x2c] sm:$0xf]
    %v1585 = vld [vmem:[#allocation6 + $0x30] sm:$0xf]
    %v1586 = vld [vmem:[#allocation6 + $0x34] sm:$0xf]
    %v1587 = vld [vmem:[#allocation6 + $0x38] sm:$0xf]
    %v1588 = vld [vmem:[#allocation6 + $0x3c] sm:$0xf]
    %v1589 = vld [vmem:[%s5] sm:$0x1]
    %v1591 = vperm.slane %v1589, 0
    %v1609 = vunpack.c.l.b16 %v1573
    %v1610 = vunpack.c.l.b16 %v1574
    %v1611 = vunpack.c.l.b16 %v1575
    %v1612 = vunpack.c.l.b16 %v1576
    %v1613 = vunpack.c.l.b16 %v1577
    %v1614 = vunpack.c.l.b16 %v1578
    %v1615 = vunpack.c.l.b16 %v1579
    %v1616 = vunpack.c.l.b16 %v1580
    %v1617 = vunpack.c.l.b16 %v1581
    %v1618 = vunpack.c.l.b16 %v1582
    %v1619 = vunpack.c.l.b16 %v1583
    %v1620 = vunpack.c.l.b16 %v1584
    %v1621 = vunpack.c.l.b16 %v1585
    %v1622 = vunpack.c.l.b16 %v1586
    %v1623 = vunpack.c.l.b16 %v1587
    %v1624 = vunpack.c.l.b16 %v1588
    %v1625 = vpack.c.b16 %v1610, %v1609
    %v1626 = vpack.c.b16 %v1612, %v1611
    %v1627 = vpack.c.b16 %v1614, %v1613
    %v1628 = vpack.c.b16 %v1616, %v1615
    %v1629 = vpack.c.b16 %v1618, %v1617
    %v1630 = vpack.c.b16 %v1620, %v1619
    %v1631 = vpack.c.b16 %v1622, %v1621
    %v1632 = vpack.c.b16 %v1624, %v1623
    %1641 = vmatpush.bf16.msra.mxu0 %v1632
    %1642 = vmatpush.bf16.msra.mxu0 %v1631
    %1643 = vmatpush.bf16.msra.mxu0 %v1630
    %1644 = vmatpush.bf16.msra.mxu0 %v1629
    %1645 = vmatpush.bf16.msra.mxu0 %v1628
    %1646 = vmatpush.bf16.msra.mxu0 %v1627
    %1647 = vmatpush.bf16.msra.mxu0 %v1626
    %1648 = vmatpush.bf16.msra.mxu0 %v1625
    %1649 = vmatmul.bf16.gmra.mxu0 %v1572
    %v1650 = vpop.f32.mrf.mxu0
    %v1651 = vadd.f32 %v1591, %v1650
    %v1652 = vpop.f32.mrf.mxu0
    %1653 = vdwg.mxu0
    %1654 = vmax.xlane.f32.xlu0 %v1651
    %v1655 = vpop.xlane.xlu0 %1654
    %v1656 = vsub.f32 %v1651, %v1655
    %v1657 = vmul.f32 %v1656, 1.442695
    %v1658 = vpow.pop %v1657
    %1659 = vadd.xlane.f32.xlu0 %v1658
    %v1660 = vpop.xlane.xlu0 %1659
    %v1661 = vlog2.pop %v1660
    %v1662 = vmul.f32 %v1661, 0.6931472
    %v1663 = vsub.f32 %v1656, %v1662
    %1664 = vst [vmem:[%s6] sm:$0xff] %v1663
    // Predicated region
    $region38: #{lstm_classifier_forward.1} parent=1 // pred_check
      _
    $region39: #{lstm_classifier_forward.1} parent=1 // pred_check_branch
      %1666 = sbr.rel (0) target = $region41
    $region40: #{lstm_classifier_forward.1} parent=1 // pred_region
      _
    $region41: #{lstm_classifier_forward.1} parent=1 // pred_fallthru
      _
    // Predicated region
    $region42: #{lstm_classifier_forward.1} parent=1 // pred_check
      _
    $region43: #{lstm_classifier_forward.1} parent=1 // pred_check_branch
      %1668 = sbr.rel (0) target = $region45
    $region44: #{lstm_classifier_forward.1} parent=1 // pred_region
      _
    $region45: #{lstm_classifier_forward.1} parent=1 // pred_fallthru
      _
    %1669 = vsyncpa [#allocation3], 1
    %1670 = vsyncpa [#allocation5], 1

</llo_original>
